<compile_context>
chip_gen: v5e
topology: v5e:2x2
jax: 0.10.0
libtpu: 0.0.40
codegen_flags: <defaults>
</compile_context>

<pallas_src>
import functools

import jax
import jax.numpy as jnp
from jax import lax
from jax.experimental import pallas as pl
from jax.experimental.pallas import tpu as pltpu


# ----------------------------------------------------------------------------
# Fused Pallas kernel
# ----------------------------------------------------------------------------
def fused_seq_kernel(idsf_ref, idsb_ref, tabf_ref, tabb_ref, whh_ref,
                     mask_ref, w1_ref, b1_ref, w2_ref, b2_ref,
                     out_ref, xg_ref,
                     *, H, B, P, Te, Tp, VK, OUT):
    """Embed-gather + merged entity/pattern BiLSTM + mean + MLP head, fused.

    Gate-lane layout (8 blocks of H): [i_f i_b f_f f_b o_f o_b g_f g_b].
    Row layout (8 sublanes): rows [0,B) = entity, rows [B, B+B*P) = patterns
    (row = B + p*B + b).  Entity h is lane-placed in [0,2H), pattern h in
    [2H,4H) of the recurrent matmul operand.
    """
    NROW = B * (P + 1)
    Tmax = max(Te, Tp)
    H2, H4, H6 = 2 * H, 4 * H, 6 * H

    # ---- prologue: fused embedding gather -> per-step gate inputs ------------
    # bf16 one-hot (0/1 exact) @ pre-folded bf16 gate tables; fwd and bwd time
    # indices are baked into the two id layouts, so xg lands directly in the
    # per-step, per-row layout the recurrence consumes (no slicing on the chain).
    lanes = lax.broadcasted_iota(jnp.int32, (Tmax * NROW, VK), 1)
    oh_f = (idsf_ref[...] == lanes).astype(jnp.bfloat16)
    oh_b = (idsb_ref[...] == lanes).astype(jnp.bfloat16)
    xg_ref[...] = (
        jnp.dot(oh_f, tabf_ref[...], preferred_element_type=jnp.float32)
        + jnp.dot(oh_b, tabb_ref[...], preferred_element_type=jnp.float32))

    whh = whh_ref[...]              # (4H, 8H) bf16, ent/pat stacked block matrix
    place = mask_ref[...]           # (NROW, 4H) f32 lane-placement mask

    h_place = jnp.zeros((NROW, H4), jnp.bfloat16)   # lane-placed matmul operand
    c = jnp.zeros((NROW, H2), jnp.float32)          # [c_fwd | c_bwd]
    h_ent_t = None
    h_pat_t = None

    for t in range(Tmax):                            # static unroll
        rec = jnp.dot(h_place, whh, preferred_element_type=jnp.float32)  # (NROW, 8H)
        g = xg_ref[pl.ds(t * NROW, NROW), :] + rec
        sio = jax.nn.sigmoid(g[:, :H6])              # [i | f | o], each 2H wide
        gg = jnp.tanh(g[:, H6:])                     # g gate, 2H wide
        c = sio[:, H2:H4] * c + sio[:, :H2] * gg     # full-width VPU cell update
        h_fb = sio[:, H4:H6] * jnp.tanh(c)           # (NROW, 2H) = [h_fwd | h_bwd]
        if t == Tp - 1:
            h_pat_t = h_fb                           # pattern LSTM final state
        if t == Te - 1:
            h_ent_t = h_fb                           # entity LSTM final state
        if t + 1 < Tmax:
            # lane-place next-step operand (entity -> [0,2H), pattern -> [2H,4H))
            h_place = (jnp.concatenate([h_fb, h_fb], axis=1)
                       * place).astype(jnp.bfloat16)

    # merged final hidden states, no sublane concat: rows <B from the entity
    # final step, rows >=B from the pattern final step.
    row_lt_b = lax.broadcasted_iota(jnp.int32, (NROW, H2), 0) < B
    merged = jnp.where(row_lt_b, h_ent_t, h_pat_t)   # (NROW, 2H)

    # ---- mean over patterns + fused MLP head ---------------------------------
    ent_h = merged[:B, :]                            # (B, 2H)
    pat_sum = merged[B:2 * B, :]
    for p in range(1, P):                            # P = 3, static
        pat_sum = pat_sum + merged[(p + 1) * B:(p + 2) * B, :]
    pat_avg = pat_sum * (1.0 / P)

    x_head = jnp.concatenate([ent_h, pat_avg], axis=1).astype(jnp.bfloat16)  # (B, 4H)
    hid = (jnp.dot(x_head, w1_ref[...], preferred_element_type=jnp.float32)
           + b1_ref[...])
    hid = jnp.maximum(hid, 0.0)                      # ReLU
    res = (jnp.dot(hid.astype(jnp.bfloat16), w2_ref[...],
                   preferred_element_type=jnp.float32) + b2_ref[...])

    # ---- packed, lane-dense output slab ---------------------------------------
    # lanes [0,2H): hidden states (entity rows then pattern rows); entity rows,
    # lanes [2H, 2H+OUT): res.  Split back apart in the wrapper.
    out_ref[...] = jnp.concatenate(
        [merged, jnp.zeros((NROW, H2), jnp.float32)], axis=1)
    out_ref[:B, 2 * H:2 * H + OUT] = res


# ----------------------------------------------------------------------------
# pallas_call wrapper (single fused launch)
# ----------------------------------------------------------------------------
def _full_spec(a):
    nd = a.ndim
    return pl.BlockSpec(tuple(a.shape), lambda i, _nd=nd: (0,) * _nd)


@functools.partial(jax.jit, static_argnames=("vocab",))
def seq_model_forward(entity_ids, pattern_ids, packed, *, vocab):
    B, Te = entity_ids.shape
    _, P, Tp = pattern_ids.shape
    Tmax = max(Te, Tp)
    NROW = B * (P + 1)
    H = packed["whh"].shape[0] // 4
    OUT = packed["w2"].shape[1]
    VK = packed["tab_f"].shape[0]
    assert OUT <= 2 * H, "packed output layout needs OUT <= 2H"

    # ---- tiny glue: per-step token-id layout (fwd / time-reversed bwd) -------
    def pad_t(x, T):            # (T, rows) -> (Tmax, rows); pad rows never read
        if T == Tmax:
            return x
        return jnp.concatenate(
            [x, jnp.zeros((Tmax - T, x.shape[1]), x.dtype)], axis=0)

    ent_f = entity_ids.T                                   # (Te, B)
    ent_b = entity_ids[:, ::-1].T                          # reversed time
    pat = jnp.transpose(pattern_ids + vocab, (2, 1, 0)).reshape(Tp, P * B)
    ids_f = jnp.concatenate([pad_t(ent_f, Te), pad_t(pat, Tp)], axis=1)
    ids_b = jnp.concatenate([pad_t(ent_b, Te), pad_t(pat[::-1], Tp)], axis=1)
    ids_f = ids_f.reshape(Tmax * NROW, 1).astype(jnp.int32)
    ids_b = ids_b.reshape(Tmax * NROW, 1).astype(jnp.int32)

    kernel = functools.partial(fused_seq_kernel, H=H, B=B, P=P, Te=Te, Tp=Tp,
                               VK=VK, OUT=OUT)
    args = (ids_f, ids_b, packed["tab_f"], packed["tab_b"], packed["whh"],
            packed["place_mask"], packed["w1"], packed["b1"],
            packed["w2"], packed["b2"])

    packed_out = pl.pallas_call(
        kernel,
        out_shape=jax.ShapeDtypeStruct((NROW, 4 * H), jnp.float32),
        grid=(1,),
        in_specs=[_full_spec(a) for a in args],
        out_specs=pl.BlockSpec((NROW, 4 * H), lambda i: (0, 0)),
        scratch_shapes=[
            pltpu.VMEM((Tmax * NROW, 8 * H), jnp.float32),   # per-step gate inputs
        ],
        compiler_params=pltpu.CompilerParams(
            dimension_semantics=("arbitrary",)),
    )(*args)

    ent_out = packed_out[:B, :2 * H]
    pat_out = packed_out[B:, :2 * H].reshape(P, B, 2 * H)
    res = packed_out[:B, 2 * H:2 * H + OUT]
    return res, ent_out, pat_out


# ----------------------------------------------------------------------------
# Wrapper-side weight packing (pure layout work, done once)
# ----------------------------------------------------------------------------
def pack_params(params, batch, num_patterns):
    """Gate-lane layout [i_f i_b f_f f_b o_f o_b g_f g_b] (each block H wide)."""
    H = params["lstm_ent"]["whh_f"].shape[0]
    V = params["ent_emb"].shape[0]
    nrow = batch * (num_patterns + 1)
    VK = max(128, ((2 * V + 127) // 128) * 128)        # pad table rows to a K tile

    def split_gates(w):                                 # PyTorch order (i, f, g, o)
        return w[..., 0:H], w[..., H:2 * H], w[..., 2 * H:3 * H], w[..., 3 * H:4 * H]

    def place(w, direction):                            # -> (..., 8H); other dir = 0
        i, f, g, o = split_gates(w)
        z = jnp.zeros_like(i)
        blocks = [i, z, f, z, o, z, g, z] if direction == 0 else \
                 [z, i, z, f, z, o, z, g]
        return jnp.concatenate(blocks, axis=-1)

    def gate_table(emb, lstm, direction):               # embed @ W_ih + bias, placed
        wih = lstm["wih_f"] if direction == 0 else lstm["wih_b"]
        b = lstm["b_f"] if direction == 0 else lstm["b_b"]
        return place(emb @ wih + b[None, :], direction)  # (V, 8H)

    def whh_block(lstm):                                 # (2H, 8H): [fwd ; bwd] rows
        return jnp.concatenate([place(lstm["whh_f"], 0),
                                place(lstm["whh_b"], 1)], axis=0)

    def stack_pad(t_ent, t_pat):                         # (2V, 8H) -> (VK, 8H) bf16
        t = jnp.concatenate([t_ent, t_pat], axis=0)
        pad = VK - 2 * V
        if pad:
            t = jnp.concatenate([t, jnp.zeros((pad, t.shape[1]), t.dtype)], axis=0)
        return t.astype(jnp.bfloat16)

    tab_f = stack_pad(gate_table(params["ent_emb"], params["lstm_ent"], 0),
                      gate_table(params["pat_emb"], params["lstm_pat"], 0))
    tab_b = stack_pad(gate_table(params["ent_emb"], params["lstm_ent"], 1),
                      gate_table(params["pat_emb"], params["lstm_pat"], 1))
    whh = jnp.concatenate([whh_block(params["lstm_ent"]),
                           whh_block(params["lstm_pat"])],
                          axis=0).astype(jnp.bfloat16)   # (4H, 8H)

    # entity rows keep h in lanes [0,2H), pattern rows in [2H,4H)
    row_is_ent = jnp.arange(nrow)[:, None] < batch
    lane_is_lo = jnp.arange(4 * H)[None, :] < 2 * H
    place_mask = (row_is_ent == lane_is_lo).astype(jnp.float32)

    return {"tab_f": tab_f, "tab_b": tab_b, "whh": whh, "place_mask": place_mask,
            "w1": params["w1"].astype(jnp.bfloat16),
            "b1": params["b1"].reshape(1, -1),
            "w2": params["w2"].astype(jnp.bfloat16),
            "b2": params["b2"].reshape(1, -1)}


# ----------------------------------------------------------------------------
# Deterministic parameter init (shapes from the module's __init__)
# ----------------------------------------------------------------------------
def init_params(key, vocab, emb, lstm_hidden, hidden, out_size):
    H = lstm_hidden
    ks = jax.random.split(key, 8)

    def u(k, shape, scale):
        return jax.random.uniform(k, shape, jnp.float32, -scale, scale)

    s = 1.0 / float(H) ** 0.5
    s1 = 1.0 / float(4 * H) ** 0.5
    s2 = 1.0 / float(hidden) ** 0.5

    def lstm(k):
        kk = jax.random.split(k, 6)
        return {"wih_f": u(kk[0], (emb, 4 * H), s), "whh_f": u(kk[1], (H, 4 * H), s),
                "b_f": u(kk[2], (4 * H,), s),          # stands in for b_ih + b_hh
                "wih_b": u(kk[3], (emb, 4 * H), s), "whh_b": u(kk[4], (H, 4 * H), s),
                "b_b": u(kk[5], (4 * H,), s)}

    return {"ent_emb": jax.random.normal(ks[0], (vocab, emb), jnp.float32),
            "pat_emb": jax.random.normal(ks[1], (vocab, emb), jnp.float32),
            "lstm_ent": lstm(ks[2]), "lstm_pat": lstm(ks[3]),
            "w1": u(ks[4], (4 * H, hidden), s1), "b1": u(ks[5], (hidden,), s1),
            "w2": u(ks[6], (hidden, out_size), s2), "b2": u(ks[7], (out_size,), s2)}


# ----------------------------------------------------------------------------
# Pure-JAX f32 reference (mirrors the PyTorch forward) for a sanity check
# ----------------------------------------------------------------------------
def reference_forward(entity_ids, pattern_ids, params):
    H = params["lstm_ent"]["whh_f"].shape[0]

    def lstm_dir(x, wih, whh, b):                       # x: (T, B, E) -> (B, H)
        Bsz = x.shape[1]

        def step(carry, x_t):
            h, c = carry
            g = x_t @ wih + h @ whh + b
            i = jax.nn.sigmoid(g[:, :H])
            f = jax.nn.sigmoid(g[:, H:2 * H])
            gg = jnp.tanh(g[:, 2 * H:3 * H])
            o = jax.nn.sigmoid(g[:, 3 * H:])
            c = f * c + i * gg
            h = o * jnp.tanh(c)
            return (h, c), None

        (h, _), _ = lax.scan(step, (jnp.zeros((Bsz, H)), jnp.zeros((Bsz, H))), x)
        return h

    def bilstm(x, p):
        hf = lstm_dir(x, p["wih_f"], p["whh_f"], p["b_f"])
        hb = lstm_dir(x[::-1], p["wih_b"], p["whh_b"], p["b_b"])
        return jnp.concatenate([hf, hb], axis=1)

    ent_x = jnp.transpose(jnp.take(params["ent_emb"], entity_ids, axis=0), (1, 0, 2))
    ent_out = bilstm(ent_x, params["lstm_ent"])

    B, P, _ = pattern_ids.shape
    outs = []
    for p in range(P):
        px = jnp.transpose(
            jnp.take(params["pat_emb"], pattern_ids[:, p, :], axis=0), (1, 0, 2))
        outs.append(bilstm(px, params["lstm_pat"]))
    pat_out = jnp.stack(outs, axis=0)
    pat_avg = jnp.mean(pat_out, axis=0)

    x = jnp.concatenate([ent_out, pat_avg], axis=1)
    h = jnp.maximum(x @ params["w1"] + params["b1"], 0.0)
    res = h @ params["w2"] + params["b2"]
    return res, ent_out, pat_out


# ----------------------------------------------------------------------------
if __name__ == "__main__":
    # word_vocab_size=50, word_embedding_size=16, lstm_hidden_size=32,
    # hidden_size=64, output_size=8; batch=2, ent_seq=8, num_patterns=3, pat_seq=6
    V, E, H, HID, OUT = 50, 16, 32, 64, 8
    B, Te, P, Tp = 2, 8, 3, 6

    key = jax.random.PRNGKey(0)
    k_ent, k_pat, k_par = jax.random.split(key, 3)
    entity_ids = jax.random.randint(k_ent, (B, Te), 0, V, dtype=jnp.int32)
    pattern_ids = jax.random.randint(k_pat, (B, P, Tp), 0, V, dtype=jnp.int32)
    params = init_params(k_par, V, E, H, HID, OUT)
    packed = pack_params(params, B, P)

    res, ent_out, pat_out = seq_model_forward(entity_ids, pattern_ids, packed,
                                              vocab=V)
    jax.block_until_ready((res, ent_out, pat_out))

    assert res.shape == (B, OUT)
    assert ent_out.shape == (B, 2 * H)
    assert pat_out.shape == (P, B, 2 * H)

    r_res, r_ent, r_pat = reference_forward(entity_ids, pattern_ids, params)
    # bf16 MXU operands (f32 accumulation, f32 gate math / carried state) vs the
    # pure-f32 reference; real bugs (gate order / direction / row placement)
    # give errors >> 4e-2.
    assert jnp.allclose(ent_out, r_ent, atol=4e-2, rtol=4e-2)
    assert jnp.allclose(pat_out, r_pat, atol=4e-2, rtol=4e-2)
    assert jnp.allclose(res, r_res, atol=4e-2, rtol=4e-2)

    print("KERNEL_OK")
</pallas_src>

<mosaic_0001>
module attributes {stable_mosaic.version = 11 : i64} {
  func.func @fused_seq_kernel(%arg0: i32, %arg1: memref<64x1xi32, #tpu.memory_space<vmem>>, %arg2: memref<64x1xi32, #tpu.memory_space<vmem>>, %arg3: memref<128x256xbf16, #tpu.memory_space<vmem>>, %arg4: memref<128x256xbf16, #tpu.memory_space<vmem>>, %arg5: memref<128x256xbf16, #tpu.memory_space<vmem>>, %arg6: memref<8x128xf32, #tpu.memory_space<vmem>>, %arg7: memref<128x64xbf16, #tpu.memory_space<vmem>>, %arg8: memref<1x64xf32, #tpu.memory_space<vmem>>, %arg9: memref<64x8xbf16, #tpu.memory_space<vmem>>, %arg10: memref<1x8xf32, #tpu.memory_space<vmem>>, %arg11: memref<8x128xf32, #tpu.memory_space<vmem>>, %arg12: memref<64x256xf32, #tpu.memory_space<vmem>>) attributes {dimension_semantics = [#tpu.dimension_semantics<arbitrary>], iteration_bounds = array<i64: 1>, scalar_prefetch = 0 : i64, scratch_operands = 1 : i64, tpu.core_type = #tpu.core_type<tc>, window_params = [{pipeline_mode = #tpu.pipeline_mode<synchronous>, transform_indices = @transform_0, window_bounds = array<i64: 64, 1>}, {pipeline_mode = #tpu.pipeline_mode<synchronous>, transform_indices = @transform_1, window_bounds = array<i64: 64, 1>}, {pipeline_mode = #tpu.pipeline_mode<synchronous>, transform_indices = @transform_2, window_bounds = array<i64: 128, 256>}, {pipeline_mode = #tpu.pipeline_mode<synchronous>, transform_indices = @transform_3, window_bounds = array<i64: 128, 256>}, {pipeline_mode = #tpu.pipeline_mode<synchronous>, transform_indices = @transform_4, window_bounds = array<i64: 128, 256>}, {pipeline_mode = #tpu.pipeline_mode<synchronous>, transform_indices = @transform_5, window_bounds = array<i64: 8, 128>}, {pipeline_mode = #tpu.pipeline_mode<synchronous>, transform_indices = @transform_6, window_bounds = array<i64: 128, 64>}, {pipeline_mode = #tpu.pipeline_mode<synchronous>, transform_indices = @transform_7, window_bounds = array<i64: 1, 64>}, {pipeline_mode = #tpu.pipeline_mode<synchronous>, transform_indices = @transform_8, window_bounds = array<i64: 64, 8>}, {pipeline_mode = #tpu.pipeline_mode<synchronous>, transform_indices = @transform_9, window_bounds = array<i64: 1, 8>}, {pipeline_mode = #tpu.pipeline_mode<synchronous>, transform_indices = @transform_10, window_bounds = array<i64: 8, 128>}]} {
    %0 = tpu.iota {dimensions = array<i32: 1>} : vector<64x128xi32>
    %c0 = arith.constant 0 : index
    %c0_0 = arith.constant 0 : index
    %1 = vector.load %arg1[%c0, %c0_0] : memref<64x1xi32, #tpu.memory_space<vmem>>, vector<64x1xi32>
    %2 = vector.broadcast %1 : vector<64x1xi32> to vector<64x128xi32>
    %3 = arith.cmpi eq, %2, %0 : vector<64x128xi32>
    %4 = arith.extui %3 : vector<64x128xi1> to vector<64x128xi32>
    %5 = arith.sitofp %4 : vector<64x128xi32> to vector<64x128xf32>
    %6 = arith.truncf %5 : vector<64x128xf32> to vector<64x128xbf16>
    %c0_1 = arith.constant 0 : index
    %c0_2 = arith.constant 0 : index
    %7 = vector.load %arg2[%c0_1, %c0_2] : memref<64x1xi32, #tpu.memory_space<vmem>>, vector<64x1xi32>
    %8 = vector.broadcast %7 : vector<64x1xi32> to vector<64x128xi32>
    %9 = arith.cmpi eq, %8, %0 : vector<64x128xi32>
    %10 = arith.extui %9 : vector<64x128xi1> to vector<64x128xi32>
    %11 = arith.sitofp %10 : vector<64x128xi32> to vector<64x128xf32>
    %12 = arith.truncf %11 : vector<64x128xf32> to vector<64x128xbf16>
    %c0_3 = arith.constant 0 : index
    %c0_4 = arith.constant 0 : index
    %13 = vector.load %arg3[%c0_3, %c0_4] : memref<128x256xbf16, #tpu.memory_space<vmem>>, vector<128x256xbf16>
    %cst = arith.constant dense<0.000000e+00> : vector<64x256xf32>
    %14 = tpu.matmul %6, %13, %cst {dimension_numbers = #tpu.dot_dimension_numbers<[1], [0], [0], [1], [0, 0, 1, 1], [], []>} : vector<64x128xbf16>, vector<128x256xbf16>, vector<64x256xf32> -> vector<64x256xf32>
    %c0_5 = arith.constant 0 : index
    %c0_6 = arith.constant 0 : index
    %15 = vector.load %arg4[%c0_5, %c0_6] : memref<128x256xbf16, #tpu.memory_space<vmem>>, vector<128x256xbf16>
    %cst_7 = arith.constant dense<0.000000e+00> : vector<64x256xf32>
    %16 = tpu.matmul %12, %15, %cst_7 {dimension_numbers = #tpu.dot_dimension_numbers<[1], [0], [0], [1], [0, 0, 1, 1], [], []>} : vector<64x128xbf16>, vector<128x256xbf16>, vector<64x256xf32> -> vector<64x256xf32>
    %17 = arith.addf %14, %16 : vector<64x256xf32>
    %c0_8 = arith.constant 0 : index
    %c0_9 = arith.constant 0 : index
    %18 = vector.load %arg12[%c0_8, %c0_9] : memref<64x256xf32, #tpu.memory_space<vmem>>, vector<64x256xf32>
    tpu.vector_store %arg12[%c0_8, %c0_9], %17 {strides = array<i32>} : memref<64x256xf32, #tpu.memory_space<vmem>>, vector<64x256xf32>,
    %c0_10 = arith.constant 0 : index
    %c0_11 = arith.constant 0 : index
    %19 = vector.load %arg5[%c0_10, %c0_11] : memref<128x256xbf16, #tpu.memory_space<vmem>>, vector<128x256xbf16>
    %c0_12 = arith.constant 0 : index
    %c0_13 = arith.constant 0 : index
    %20 = vector.load %arg6[%c0_12, %c0_13] : memref<8x128xf32, #tpu.memory_space<vmem>>, vector<8x128xf32>
    %cst_14 = arith.constant 0.000000e+00 : bf16
    %21 = vector.broadcast %cst_14 : bf16 to vector<8x128xbf16>
    %cst_15 = arith.constant 0.000000e+00 : f32
    %22 = vector.broadcast %cst_15 : f32 to vector<8x64xf32>
    %cst_16 = arith.constant dense<0.000000e+00> : vector<8x256xf32>
    %23 = tpu.matmul %21, %19, %cst_16 {dimension_numbers = #tpu.dot_dimension_numbers<[1], [0], [0], [1], [0, 0, 1, 1], [], []>} : vector<8x128xbf16>, vector<128x256xbf16>, vector<8x256xf32> -> vector<8x256xf32>
    %c0_17 = arith.constant 0 : index
    %c0_18 = arith.constant 0 : index
    %24 = vector.load %arg12[%c0_17, %c0_18] : memref<64x256xf32, #tpu.memory_space<vmem>>, vector<8x256xf32>
    %25 = arith.addf %24, %23 : vector<8x256xf32>
    %26 = vector.extract_strided_slice %25 {offsets = [0, 0], sizes = [8, 192], strides = [1, 1]} : vector<8x256xf32> to vector<8x192xf32>
    %27 = arith.negf %26 : vector<8x192xf32>
    %28 = math.exp %27 : vector<8x192xf32>
    %cst_19 = arith.constant 1.000000e+00 : f32
    %29 = vector.broadcast %cst_19 : f32 to vector<8x192xf32>
    %30 = arith.addf %29, %28 : vector<8x192xf32>
    %31 = arith.divf %29, %30 : vector<8x192xf32>
    %32 = vector.extract_strided_slice %25 {offsets = [0, 192], sizes = [8, 64], strides = [1, 1]} : vector<8x256xf32> to vector<8x64xf32>
    %33 = math.tanh %32 : vector<8x64xf32>
    %34 = vector.extract_strided_slice %31 {offsets = [0, 64], sizes = [8, 64], strides = [1, 1]} : vector<8x192xf32> to vector<8x64xf32>
    %35 = arith.mulf %34, %22 : vector<8x64xf32>
    %36 = vector.extract_strided_slice %31 {offsets = [0, 0], sizes = [8, 64], strides = [1, 1]} : vector<8x192xf32> to vector<8x64xf32>
    %37 = arith.mulf %36, %33 : vector<8x64xf32>
    %38 = arith.addf %35, %37 : vector<8x64xf32>
    %39 = vector.extract_strided_slice %31 {offsets = [0, 128], sizes = [8, 64], strides = [1, 1]} : vector<8x192xf32> to vector<8x64xf32>
    %40 = math.tanh %38 : vector<8x64xf32>
    %41 = arith.mulf %39, %40 : vector<8x64xf32>
    %42 = tpu.concatenate %41, %41 in 1 : vector<8x64xf32>, vector<8x64xf32> -> vector<8x128xf32>
    %43 = arith.mulf %42, %20 : vector<8x128xf32>
    %44 = arith.truncf %43 : vector<8x128xf32> to vector<8x128xbf16>
    %cst_20 = arith.constant dense<0.000000e+00> : vector<8x256xf32>
    %45 = tpu.matmul %44, %19, %cst_20 {dimension_numbers = #tpu.dot_dimension_numbers<[1], [0], [0], [1], [0, 0, 1, 1], [], []>} : vector<8x128xbf16>, vector<128x256xbf16>, vector<8x256xf32> -> vector<8x256xf32>
    %c8 = arith.constant 8 : index
    %c0_21 = arith.constant 0 : index
    %46 = vector.load %arg12[%c8, %c0_21] : memref<64x256xf32, #tpu.memory_space<vmem>>, vector<8x256xf32>
    %47 = arith.addf %46, %45 : vector<8x256xf32>
    %48 = vector.extract_strided_slice %47 {offsets = [0, 0], sizes = [8, 192], strides = [1, 1]} : vector<8x256xf32> to vector<8x192xf32>
    %49 = arith.negf %48 : vector<8x192xf32>
    %50 = math.exp %49 : vector<8x192xf32>
    %cst_22 = arith.constant 1.000000e+00 : f32
    %51 = vector.broadcast %cst_22 : f32 to vector<8x192xf32>
    %52 = arith.addf %51, %50 : vector<8x192xf32>
    %53 = arith.divf %51, %52 : vector<8x192xf32>
    %54 = vector.extract_strided_slice %47 {offsets = [0, 192], sizes = [8, 64], strides = [1, 1]} : vector<8x256xf32> to vector<8x64xf32>
    %55 = math.tanh %54 : vector<8x64xf32>
    %56 = vector.extract_strided_slice %53 {offsets = [0, 64], sizes = [8, 64], strides = [1, 1]} : vector<8x192xf32> to vector<8x64xf32>
    %57 = arith.mulf %56, %38 : vector<8x64xf32>
    %58 = vector.extract_strided_slice %53 {offsets = [0, 0], sizes = [8, 64], strides = [1, 1]} : vector<8x192xf32> to vector<8x64xf32>
    %59 = arith.mulf %58, %55 : vector<8x64xf32>
    %60 = arith.addf %57, %59 : vector<8x64xf32>
    %61 = vector.extract_strided_slice %53 {offsets = [0, 128], sizes = [8, 64], strides = [1, 1]} : vector<8x192xf32> to vector<8x64xf32>
    %62 = math.tanh %60 : vector<8x64xf32>
    %63 = arith.mulf %61, %62 : vector<8x64xf32>
    %64 = tpu.concatenate %63, %63 in 1 : vector<8x64xf32>, vector<8x64xf32> -> vector<8x128xf32>
    %65 = arith.mulf %64, %20 : vector<8x128xf32>
    %66 = arith.truncf %65 : vector<8x128xf32> to vector<8x128xbf16>
    %cst_23 = arith.constant dense<0.000000e+00> : vector<8x256xf32>
    %67 = tpu.matmul %66, %19, %cst_23 {dimension_numbers = #tpu.dot_dimension_numbers<[1], [0], [0], [1], [0, 0, 1, 1], [], []>} : vector<8x128xbf16>, vector<128x256xbf16>, vector<8x256xf32> -> vector<8x256xf32>
    %c16 = arith.constant 16 : index
    %c0_24 = arith.constant 0 : index
    %68 = vector.load %arg12[%c16, %c0_24] : memref<64x256xf32, #tpu.memory_space<vmem>>, vector<8x256xf32>
    %69 = arith.addf %68, %67 : vector<8x256xf32>
    %70 = vector.extract_strided_slice %69 {offsets = [0, 0], sizes = [8, 192], strides = [1, 1]} : vector<8x256xf32> to vector<8x192xf32>
    %71 = arith.negf %70 : vector<8x192xf32>
    %72 = math.exp %71 : vector<8x192xf32>
    %cst_25 = arith.constant 1.000000e+00 : f32
    %73 = vector.broadcast %cst_25 : f32 to vector<8x192xf32>
    %74 = arith.addf %73, %72 : vector<8x192xf32>
    %75 = arith.divf %73, %74 : vector<8x192xf32>
    %76 = vector.extract_strided_slice %69 {offsets = [0, 192], sizes = [8, 64], strides = [1, 1]} : vector<8x256xf32> to vector<8x64xf32>
    %77 = math.tanh %76 : vector<8x64xf32>
    %78 = vector.extract_strided_slice %75 {offsets = [0, 64], sizes = [8, 64], strides = [1, 1]} : vector<8x192xf32> to vector<8x64xf32>
    %79 = arith.mulf %78, %60 : vector<8x64xf32>
    %80 = vector.extract_strided_slice %75 {offsets = [0, 0], sizes = [8, 64], strides = [1, 1]} : vector<8x192xf32> to vector<8x64xf32>
    %81 = arith.mulf %80, %77 : vector<8x64xf32>
    %82 = arith.addf %79, %81 : vector<8x64xf32>
    %83 = vector.extract_strided_slice %75 {offsets = [0, 128], sizes = [8, 64], strides = [1, 1]} : vector<8x192xf32> to vector<8x64xf32>
    %84 = math.tanh %82 : vector<8x64xf32>
    %85 = arith.mulf %83, %84 : vector<8x64xf32>
    %86 = tpu.concatenate %85, %85 in 1 : vector<8x64xf32>, vector<8x64xf32> -> vector<8x128xf32>
    %87 = arith.mulf %86, %20 : vector<8x128xf32>
    %88 = arith.truncf %87 : vector<8x128xf32> to vector<8x128xbf16>
    %cst_26 = arith.constant dense<0.000000e+00> : vector<8x256xf32>
    %89 = tpu.matmul %88, %19, %cst_26 {dimension_numbers = #tpu.dot_dimension_numbers<[1], [0], [0], [1], [0, 0, 1, 1], [], []>} : vector<8x128xbf16>, vector<128x256xbf16>, vector<8x256xf32> -> vector<8x256xf32>
    %c24 = arith.constant 24 : index
    %c0_27 = arith.constant 0 : index
    %90 = vector.load %arg12[%c24, %c0_27] : memref<64x256xf32, #tpu.memory_space<vmem>>, vector<8x256xf32>
    %91 = arith.addf %90, %89 : vector<8x256xf32>
    %92 = vector.extract_strided_slice %91 {offsets = [0, 0], sizes = [8, 192], strides = [1, 1]} : vector<8x256xf32> to vector<8x192xf32>
    %93 = arith.negf %92 : vector<8x192xf32>
    %94 = math.exp %93 : vector<8x192xf32>
    %cst_28 = arith.constant 1.000000e+00 : f32
    %95 = vector.broadcast %cst_28 : f32 to vector<8x192xf32>
    %96 = arith.addf %95, %94 : vector<8x192xf32>
    %97 = arith.divf %95, %96 : vector<8x192xf32>
    %98 = vector.extract_strided_slice %91 {offsets = [0, 192], sizes = [8, 64], strides = [1, 1]} : vector<8x256xf32> to vector<8x64xf32>
    %99 = math.tanh %98 : vector<8x64xf32>
    %100 = vector.extract_strided_slice %97 {offsets = [0, 64], sizes = [8, 64], strides = [1, 1]} : vector<8x192xf32> to vector<8x64xf32>
    %101 = arith.mulf %100, %82 : vector<8x64xf32>
    %102 = vector.extract_strided_slice %97 {offsets = [0, 0], sizes = [8, 64], strides = [1, 1]} : vector<8x192xf32> to vector<8x64xf32>
    %103 = arith.mulf %102, %99 : vector<8x64xf32>
    %104 = arith.addf %101, %103 : vector<8x64xf32>
    %105 = vector.extract_strided_slice %97 {offsets = [0, 128], sizes = [8, 64], strides = [1, 1]} : vector<8x192xf32> to vector<8x64xf32>
    %106 = math.tanh %104 : vector<8x64xf32>
    %107 = arith.mulf %105, %106 : vector<8x64xf32>
    %108 = tpu.concatenate %107, %107 in 1 : vector<8x64xf32>, vector<8x64xf32> -> vector<8x128xf32>
    %109 = arith.mulf %108, %20 : vector<8x128xf32>
    %110 = arith.truncf %109 : vector<8x128xf32> to vector<8x128xbf16>
    %cst_29 = arith.constant dense<0.000000e+00> : vector<8x256xf32>
    %111 = tpu.matmul %110, %19, %cst_29 {dimension_numbers = #tpu.dot_dimension_numbers<[1], [0], [0], [1], [0, 0, 1, 1], [], []>} : vector<8x128xbf16>, vector<128x256xbf16>, vector<8x256xf32> -> vector<8x256xf32>
    %c32 = arith.constant 32 : index
    %c0_30 = arith.constant 0 : index
    %112 = vector.load %arg12[%c32, %c0_30] : memref<64x256xf32, #tpu.memory_space<vmem>>, vector<8x256xf32>
    %113 = arith.addf %112, %111 : vector<8x256xf32>
    %114 = vector.extract_strided_slice %113 {offsets = [0, 0], sizes = [8, 192], strides = [1, 1]} : vector<8x256xf32> to vector<8x192xf32>
    %115 = arith.negf %114 : vector<8x192xf32>
    %116 = math.exp %115 : vector<8x192xf32>
    %cst_31 = arith.constant 1.000000e+00 : f32
    %117 = vector.broadcast %cst_31 : f32 to vector<8x192xf32>
    %118 = arith.addf %117, %116 : vector<8x192xf32>
    %119 = arith.divf %117, %118 : vector<8x192xf32>
    %120 = vector.extract_strided_slice %113 {offsets = [0, 192], sizes = [8, 64], strides = [1, 1]} : vector<8x256xf32> to vector<8x64xf32>
    %121 = math.tanh %120 : vector<8x64xf32>
    %122 = vector.extract_strided_slice %119 {offsets = [0, 64], sizes = [8, 64], strides = [1, 1]} : vector<8x192xf32> to vector<8x64xf32>
    %123 = arith.mulf %122, %104 : vector<8x64xf32>
    %124 = vector.extract_strided_slice %119 {offsets = [0, 0], sizes = [8, 64], strides = [1, 1]} : vector<8x192xf32> to vector<8x64xf32>
    %125 = arith.mulf %124, %121 : vector<8x64xf32>
    %126 = arith.addf %123, %125 : vector<8x64xf32>
    %127 = vector.extract_strided_slice %119 {offsets = [0, 128], sizes = [8, 64], strides = [1, 1]} : vector<8x192xf32> to vector<8x64xf32>
    %128 = math.tanh %126 : vector<8x64xf32>
    %129 = arith.mulf %127, %128 : vector<8x64xf32>
    %130 = tpu.concatenate %129, %129 in 1 : vector<8x64xf32>, vector<8x64xf32> -> vector<8x128xf32>
    %131 = arith.mulf %130, %20 : vector<8x128xf32>
    %132 = arith.truncf %131 : vector<8x128xf32> to vector<8x128xbf16>
    %cst_32 = arith.constant dense<0.000000e+00> : vector<8x256xf32>
    %133 = tpu.matmul %132, %19, %cst_32 {dimension_numbers = #tpu.dot_dimension_numbers<[1], [0], [0], [1], [0, 0, 1, 1], [], []>} : vector<8x128xbf16>, vector<128x256xbf16>, vector<8x256xf32> -> vector<8x256xf32>
    %c40 = arith.constant 40 : index
    %c0_33 = arith.constant 0 : index
    %134 = vector.load %arg12[%c40, %c0_33] : memref<64x256xf32, #tpu.memory_space<vmem>>, vector<8x256xf32>
    %135 = arith.addf %134, %133 : vector<8x256xf32>
    %136 = vector.extract_strided_slice %135 {offsets = [0, 0], sizes = [8, 192], strides = [1, 1]} : vector<8x256xf32> to vector<8x192xf32>
    %137 = arith.negf %136 : vector<8x192xf32>
    %138 = math.exp %137 : vector<8x192xf32>
    %cst_34 = arith.constant 1.000000e+00 : f32
    %139 = vector.broadcast %cst_34 : f32 to vector<8x192xf32>
    %140 = arith.addf %139, %138 : vector<8x192xf32>
    %141 = arith.divf %139, %140 : vector<8x192xf32>
    %142 = vector.extract_strided_slice %135 {offsets = [0, 192], sizes = [8, 64], strides = [1, 1]} : vector<8x256xf32> to vector<8x64xf32>
    %143 = math.tanh %142 : vector<8x64xf32>
    %144 = vector.extract_strided_slice %141 {offsets = [0, 64], sizes = [8, 64], strides = [1, 1]} : vector<8x192xf32> to vector<8x64xf32>
    %145 = arith.mulf %144, %126 : vector<8x64xf32>
    %146 = vector.extract_strided_slice %141 {offsets = [0, 0], sizes = [8, 64], strides = [1, 1]} : vector<8x192xf32> to vector<8x64xf32>
    %147 = arith.mulf %146, %143 : vector<8x64xf32>
    %148 = arith.addf %145, %147 : vector<8x64xf32>
    %149 = vector.extract_strided_slice %141 {offsets = [0, 128], sizes = [8, 64], strides = [1, 1]} : vector<8x192xf32> to vector<8x64xf32>
    %150 = math.tanh %148 : vector<8x64xf32>
    %151 = arith.mulf %149, %150 : vector<8x64xf32>
    %152 = tpu.concatenate %151, %151 in 1 : vector<8x64xf32>, vector<8x64xf32> -> vector<8x128xf32>
    %153 = arith.mulf %152, %20 : vector<8x128xf32>
    %154 = arith.truncf %153 : vector<8x128xf32> to vector<8x128xbf16>
    %cst_35 = arith.constant dense<0.000000e+00> : vector<8x256xf32>
    %155 = tpu.matmul %154, %19, %cst_35 {dimension_numbers = #tpu.dot_dimension_numbers<[1], [0], [0], [1], [0, 0, 1, 1], [], []>} : vector<8x128xbf16>, vector<128x256xbf16>, vector<8x256xf32> -> vector<8x256xf32>
    %c48 = arith.constant 48 : index
    %c0_36 = arith.constant 0 : index
    %156 = vector.load %arg12[%c48, %c0_36] : memref<64x256xf32, #tpu.memory_space<vmem>>, vector<8x256xf32>
    %157 = arith.addf %156, %155 : vector<8x256xf32>
    %158 = vector.extract_strided_slice %157 {offsets = [0, 0], sizes = [8, 192], strides = [1, 1]} : vector<8x256xf32> to vector<8x192xf32>
    %159 = arith.negf %158 : vector<8x192xf32>
    %160 = math.exp %159 : vector<8x192xf32>
    %cst_37 = arith.constant 1.000000e+00 : f32
    %161 = vector.broadcast %cst_37 : f32 to vector<8x192xf32>
    %162 = arith.addf %161, %160 : vector<8x192xf32>
    %163 = arith.divf %161, %162 : vector<8x192xf32>
    %164 = vector.extract_strided_slice %157 {offsets = [0, 192], sizes = [8, 64], strides = [1, 1]} : vector<8x256xf32> to vector<8x64xf32>
    %165 = math.tanh %164 : vector<8x64xf32>
    %166 = vector.extract_strided_slice %163 {offsets = [0, 64], sizes = [8, 64], strides = [1, 1]} : vector<8x192xf32> to vector<8x64xf32>
    %167 = arith.mulf %166, %148 : vector<8x64xf32>
    %168 = vector.extract_strided_slice %163 {offsets = [0, 0], sizes = [8, 64], strides = [1, 1]} : vector<8x192xf32> to vector<8x64xf32>
    %169 = arith.mulf %168, %165 : vector<8x64xf32>
    %170 = arith.addf %167, %169 : vector<8x64xf32>
    %171 = vector.extract_strided_slice %163 {offsets = [0, 128], sizes = [8, 64], strides = [1, 1]} : vector<8x192xf32> to vector<8x64xf32>
    %172 = math.tanh %170 : vector<8x64xf32>
    %173 = arith.mulf %171, %172 : vector<8x64xf32>
    %174 = tpu.concatenate %173, %173 in 1 : vector<8x64xf32>, vector<8x64xf32> -> vector<8x128xf32>
    %175 = arith.mulf %174, %20 : vector<8x128xf32>
    %176 = arith.truncf %175 : vector<8x128xf32> to vector<8x128xbf16>
    %cst_38 = arith.constant dense<0.000000e+00> : vector<8x256xf32>
    %177 = tpu.matmul %176, %19, %cst_38 {dimension_numbers = #tpu.dot_dimension_numbers<[1], [0], [0], [1], [0, 0, 1, 1], [], []>} : vector<8x128xbf16>, vector<128x256xbf16>, vector<8x256xf32> -> vector<8x256xf32>
    %c56 = arith.constant 56 : index
    %c0_39 = arith.constant 0 : index
    %178 = vector.load %arg12[%c56, %c0_39] : memref<64x256xf32, #tpu.memory_space<vmem>>, vector<8x256xf32>
    %179 = arith.addf %178, %177 : vector<8x256xf32>
    %180 = vector.extract_strided_slice %179 {offsets = [0, 0], sizes = [8, 192], strides = [1, 1]} : vector<8x256xf32> to vector<8x192xf32>
    %181 = arith.negf %180 : vector<8x192xf32>
    %182 = math.exp %181 : vector<8x192xf32>
    %cst_40 = arith.constant 1.000000e+00 : f32
    %183 = vector.broadcast %cst_40 : f32 to vector<8x192xf32>
    %184 = arith.addf %183, %182 : vector<8x192xf32>
    %185 = arith.divf %183, %184 : vector<8x192xf32>
    %186 = vector.extract_strided_slice %179 {offsets = [0, 192], sizes = [8, 64], strides = [1, 1]} : vector<8x256xf32> to vector<8x64xf32>
    %187 = math.tanh %186 : vector<8x64xf32>
    %188 = vector.extract_strided_slice %185 {offsets = [0, 64], sizes = [8, 64], strides = [1, 1]} : vector<8x192xf32> to vector<8x64xf32>
    %189 = arith.mulf %188, %170 : vector<8x64xf32>
    %190 = vector.extract_strided_slice %185 {offsets = [0, 0], sizes = [8, 64], strides = [1, 1]} : vector<8x192xf32> to vector<8x64xf32>
    %191 = arith.mulf %190, %187 : vector<8x64xf32>
    %192 = arith.addf %189, %191 : vector<8x64xf32>
    %193 = vector.extract_strided_slice %185 {offsets = [0, 128], sizes = [8, 64], strides = [1, 1]} : vector<8x192xf32> to vector<8x64xf32>
    %194 = math.tanh %192 : vector<8x64xf32>
    %195 = arith.mulf %193, %194 : vector<8x64xf32>
    %196 = tpu.iota {dimensions = array<i32: 0>} : vector<8x64xi32>
    %c2_i32 = arith.constant 2 : i32
    %197 = vector.broadcast %c2_i32 : i32 to vector<8x64xi32>
    %198 = arith.cmpi slt, %196, %197 : vector<8x64xi32>
    %199 = arith.select %198, %195, %151 : vector<8x64xi1>, vector<8x64xf32>
    %200 = vector.extract_strided_slice %199 {offsets = [0, 0], sizes = [2, 64], strides = [1, 1]} : vector<8x64xf32> to vector<2x64xf32>
    %201 = vector.extract_strided_slice %199 {offsets = [2, 0], sizes = [2, 64], strides = [1, 1]} : vector<8x64xf32> to vector<2x64xf32>
    %202 = vector.extract_strided_slice %199 {offsets = [4, 0], sizes = [2, 64], strides = [1, 1]} : vector<8x64xf32> to vector<2x64xf32>
    %203 = arith.addf %201, %202 : vector<2x64xf32>
    %204 = vector.extract_strided_slice %199 {offsets = [6, 0], sizes = [2, 64], strides = [1, 1]} : vector<8x64xf32> to vector<2x64xf32>
    %205 = arith.addf %203, %204 : vector<2x64xf32>
    %cst_41 = arith.constant 0.333333343 : f32
    %206 = vector.broadcast %cst_41 : f32 to vector<2x64xf32>
    %207 = arith.mulf %205, %206 : vector<2x64xf32>
    %208 = tpu.concatenate %200, %207 in 1 : vector<2x64xf32>, vector<2x64xf32> -> vector<2x128xf32>
    %209 = arith.truncf %208 : vector<2x128xf32> to vector<2x128xbf16>
    %c0_42 = arith.constant 0 : index
    %c0_43 = arith.constant 0 : index
    %210 = vector.load %arg7[%c0_42, %c0_43] : memref<128x64xbf16, #tpu.memory_space<vmem>>, vector<128x64xbf16>
    %cst_44 = arith.constant dense<0.000000e+00> : vector<2x64xf32>
    %211 = tpu.matmul %209, %210, %cst_44 {dimension_numbers = #tpu.dot_dimension_numbers<[1], [0], [0], [1], [0, 0, 1, 1], [], []>} : vector<2x128xbf16>, vector<128x64xbf16>, vector<2x64xf32> -> vector<2x64xf32>
    %c0_45 = arith.constant 0 : index
    %c0_46 = arith.constant 0 : index
    %212 = vector.load %arg8[%c0_45, %c0_46] : memref<1x64xf32, #tpu.memory_space<vmem>>, vector<1x64xf32>
    %213 = vector.broadcast %212 : vector<1x64xf32> to vector<2x64xf32>
    %214 = arith.addf %211, %213 : vector<2x64xf32>
    %cst_47 = arith.constant 0.000000e+00 : f32
    %215 = vector.broadcast %cst_47 : f32 to vector<2x64xf32>
    %216 = arith.maximumf %214, %215 : vector<2x64xf32>
    %217 = arith.truncf %216 : vector<2x64xf32> to vector<2x64xbf16>
    %c0_48 = arith.constant 0 : index
    %c0_49 = arith.constant 0 : index
    %218 = vector.load %arg9[%c0_48, %c0_49] : memref<64x8xbf16, #tpu.memory_space<vmem>>, vector<64x8xbf16>
    %cst_50 = arith.constant dense<0.000000e+00> : vector<2x8xf32>
    %219 = tpu.matmul %217, %218, %cst_50 {dimension_numbers = #tpu.dot_dimension_numbers<[1], [0], [0], [1], [0, 0, 1, 1], [], []>} : vector<2x64xbf16>, vector<64x8xbf16>, vector<2x8xf32> -> vector<2x8xf32>
    %c0_51 = arith.constant 0 : index
    %c0_52 = arith.constant 0 : index
    %220 = vector.load %arg10[%c0_51, %c0_52] : memref<1x8xf32, #tpu.memory_space<vmem>>, vector<1x8xf32>
    %221 = vector.broadcast %220 : vector<1x8xf32> to vector<2x8xf32>
    %222 = arith.addf %219, %221 : vector<2x8xf32>
    %cst_53 = arith.constant 0.000000e+00 : f32
    %223 = vector.broadcast %cst_53 : f32 to vector<8x64xf32>
    %224 = tpu.concatenate %199, %223 in 1 : vector<8x64xf32>, vector<8x64xf32> -> vector<8x128xf32>
    %c0_54 = arith.constant 0 : index
    %c0_55 = arith.constant 0 : index
    %225 = vector.load %arg11[%c0_54, %c0_55] : memref<8x128xf32, #tpu.memory_space<vmem>>, vector<8x128xf32>
    tpu.vector_store %arg11[%c0_54, %c0_55], %224 {strides = array<i32>} : memref<8x128xf32, #tpu.memory_space<vmem>>, vector<8x128xf32>,
    %c0_56 = arith.constant 0 : index
    %c64 = arith.constant 64 : index
    %226 = vector.load %arg11[%c0_56, %c64] : memref<8x128xf32, #tpu.memory_space<vmem>>, vector<2x8xf32>
    tpu.vector_store %arg11[%c0_56, %c64], %222 {strides = array<i32>} : memref<8x128xf32, #tpu.memory_space<vmem>>, vector<2x8xf32>,
    return
  }
  func.func @transform_0(%arg0: i32) -> (i32, i32) {
    %c0_i32 = arith.constant 0 : i32
    %c0_i32_0 = arith.constant 0 : i32
    %c0_i32_1 = arith.constant 0 : i32
    return %c0_i32, %c0_i32_0 : i32, i32
  }
  func.func @transform_1(%arg0: i32) -> (i32, i32) {
    %c0_i32 = arith.constant 0 : i32
    %c0_i32_0 = arith.constant 0 : i32
    %c0_i32_1 = arith.constant 0 : i32
    return %c0_i32, %c0_i32_0 : i32, i32
  }
  func.func @transform_2(%arg0: i32) -> (i32, i32) {
    %c0_i32 = arith.constant 0 : i32
    %c0_i32_0 = arith.constant 0 : i32
    %c0_i32_1 = arith.constant 0 : i32
    return %c0_i32, %c0_i32_0 : i32, i32
  }
  func.func @transform_3(%arg0: i32) -> (i32, i32) {
    %c0_i32 = arith.constant 0 : i32
    %c0_i32_0 = arith.constant 0 : i32
    %c0_i32_1 = arith.constant 0 : i32
    return %c0_i32, %c0_i32_0 : i32, i32
  }
  func.func @transform_4(%arg0: i32) -> (i32, i32) {
    %c0_i32 = arith.constant 0 : i32
    %c0_i32_0 = arith.constant 0 : i32
    %c0_i32_1 = arith.constant 0 : i32
    return %c0_i32, %c0_i32_0 : i32, i32
  }
  func.func @transform_5(%arg0: i32) -> (i32, i32) {
    %c0_i32 = arith.constant 0 : i32
    %c0_i32_0 = arith.constant 0 : i32
    %c0_i32_1 = arith.constant 0 : i32
    return %c0_i32, %c0_i32_0 : i32, i32
  }
  func.func @transform_6(%arg0: i32) -> (i32, i32) {
    %c0_i32 = arith.constant 0 : i32
    %c0_i32_0 = arith.constant 0 : i32
    %c0_i32_1 = arith.constant 0 : i32
    return %c0_i32, %c0_i32_0 : i32, i32
  }
  func.func @transform_7(%arg0: i32) -> (i32, i32) {
    %c0_i32 = arith.constant 0 : i32
    %c0_i32_0 = arith.constant 0 : i32
    %c0_i32_1 = arith.constant 0 : i32
    return %c0_i32, %c0_i32_0 : i32, i32
  }
  func.func @transform_8(%arg0: i32) -> (i32, i32) {
    %c0_i32 = arith.constant 0 : i32
    %c0_i32_0 = arith.constant 0 : i32
    %c0_i32_1 = arith.constant 0 : i32
    return %c0_i32, %c0_i32_0 : i32, i32
  }
  func.func @transform_9(%arg0: i32) -> (i32, i32) {
    %c0_i32 = arith.constant 0 : i32
    %c0_i32_0 = arith.constant 0 : i32
    %c0_i32_1 = arith.constant 0 : i32
    return %c0_i32, %c0_i32_0 : i32, i32
  }
  func.func @transform_10(%arg0: i32) -> (i32, i32) {
    %c0_i32 = arith.constant 0 : i32
    %c0_i32_0 = arith.constant 0 : i32
    %c0_i32_1 = arith.constant 0 : i32
    return %c0_i32, %c0_i32_0 : i32, i32
  }
}

</mosaic_0001>

<llo_original>
// kernel: seq_model_forward.1
$region0: #{seq_model_forward.1}
  #allocation0 [shape = 'u32[]', space=smem, size = 0x4, offset = 0x4, fixed_abs, tag = 'smem constant byte address 0x4 - core index']
  #allocation1 [shape = 'u32[72,128]{1,0:T(1,128)}', space=vmem, size = 0x9000, scoped, tag = 'internal scratch']
  #allocation2 [shape = 'f32[64,256]{1,0:T(8,128)}', space=vmem, size = 0x10000, scoped, tag = 'scratch operand']
  %s0 = inlined_call_operand.vmem [shape: s32[64,1], index: 0, kind: input, shape index: {}]
  %s1 = inlined_call_operand.vmem [shape: s32[64,1], index: 1, kind: input, shape index: {}]
  %s2 = inlined_call_operand.vmem [shape: bf16[128,256], index: 2, kind: input, shape index: {}]
  %s3 = inlined_call_operand.vmem [shape: bf16[128,256], index: 3, kind: input, shape index: {}]
  %s4 = inlined_call_operand.hbm [shape: bf16[128,256], index: 4, kind: input, shape index: {}]
  %s5 = inlined_call_operand.vmem [shape: f32[8,128], index: 5, kind: input, shape index: {}]
  %s6 = inlined_call_operand.vmem [shape: bf16[128,64], index: 6, kind: input, shape index: {}]
  %s7 = inlined_call_operand.vmem [shape: f32[1,64], index: 7, kind: input, shape index: {}]
  %s8 = inlined_call_operand.vmem [shape: bf16[64,8], index: 8, kind: input, shape index: {}]
  %s9 = inlined_call_operand.vmem [shape: f32[1,8], index: 9, kind: input, shape index: {}]
  %s10 = inlined_call_operand.vmem [shape: f32[8,128], index: 10, kind: output, shape index: {}]
  %s11 = sld [smem:[#allocation0]]
  $region54: #{seq_model_forward.1} parent=0
    _
  %s13 = ssub.s32 1, %s11
  %s14 = scalar_select 0, %s13, %s11
  $region1: #{seq_model_forward.1} parent=0
    #allocation3 [shape = 'u8[65536]{0}', space=vmem, size = 0x10000, scoped, tag = 'input window, operand 4, single buffered']
    #allocation4 [shape = 's32[1]{0}', space=sflag, size = 0x4, scoped, tag = 'scoped memory for seq_model_forward.1']
    %15 = vsyncpa [#allocation4], 0
    // Predicated region
    $region2: #{seq_model_forward.1} parent=1 // pred_check
      _
    $region3: #{seq_model_forward.1} parent=1 // pred_check_branch
      %17 = sbr.rel (0) target = $region5
    $region4: #{seq_model_forward.1} parent=1 // pred_region
      _
    $region5: #{seq_model_forward.1} parent=1 // pred_fallthru
      _
    // Predicated region
    $region6: #{seq_model_forward.1} parent=1 // pred_check
      _
    $region7: #{seq_model_forward.1} parent=1 // pred_check_branch
      %19 = sbr.rel (0) target = $region9
    $region8: #{seq_model_forward.1} parent=1 // pred_region
      _
    $region9: #{seq_model_forward.1} parent=1 // pred_fallthru
      _
    // Predicated region
    $region10: #{seq_model_forward.1} parent=1 // pred_check
      _
    $region11: #{seq_model_forward.1} parent=1 // pred_check_branch
      %21 = sbr.rel (0) target = $region13
    $region12: #{seq_model_forward.1} parent=1 // pred_region
      _
    $region13: #{seq_model_forward.1} parent=1 // pred_fallthru
      _
    // Predicated region
    $region14: #{seq_model_forward.1} parent=1 // pred_check
      _
    $region15: #{seq_model_forward.1} parent=1 // pred_check_branch
      %23 = sbr.rel (0) target = $region17
    $region16: #{seq_model_forward.1} parent=1 // pred_region
      _
    $region17: #{seq_model_forward.1} parent=1 // pred_fallthru
      _
    // Predicated region
    $region18: #{seq_model_forward.1} parent=1 // pred_check
      _
    $region19: #{seq_model_forward.1} parent=1 // pred_check_branch
      %25 = sbr.rel (0) target = $region21
    $region20: #{seq_model_forward.1} parent=1 // pred_region
      %27 = vsyncadd [#allocation4], 0
      %s28 = sshll.u32 %s4, 4
      %s29 = int_to_ptr.hbm [resolvable:$true] %s28
      %s30 = sshll.u32 [#allocation3], 4
      %s31 = int_to_ptr.vmem [resolvable:$true] %s30
      %36 = dma.hbm_to_vmem [thread:$0]  %s29, 2048, %s31, [#allocation4], 128, 128, 8
    $region21: #{seq_model_forward.1} parent=1 // pred_fallthru
      _
    // Predicated region
    $region22: #{seq_model_forward.1} parent=1 // pred_check
      _
    $region23: #{seq_model_forward.1} parent=1 // pred_check_branch
      %38 = sbr.rel (0) target = $region25
    $region24: #{seq_model_forward.1} parent=1 // pred_region
      _
    $region25: #{seq_model_forward.1} parent=1 // pred_fallthru
      _
    // Predicated region
    $region26: #{seq_model_forward.1} parent=1 // pred_check
      _
    $region27: #{seq_model_forward.1} parent=1 // pred_check_branch
      %40 = sbr.rel (0) target = $region29
    $region28: #{seq_model_forward.1} parent=1 // pred_region
      _
    $region29: #{seq_model_forward.1} parent=1 // pred_fallthru
      _
    // Predicated region
    $region30: #{seq_model_forward.1} parent=1 // pred_check
      _
    $region31: #{seq_model_forward.1} parent=1 // pred_check_branch
      %42 = sbr.rel (0) target = $region33
    $region32: #{seq_model_forward.1} parent=1 // pred_region
      _
    $region33: #{seq_model_forward.1} parent=1 // pred_fallthru
      _
    // Predicated region
    $region34: #{seq_model_forward.1} parent=1 // pred_check
      _
    $region35: #{seq_model_forward.1} parent=1 // pred_check_branch
      %44 = sbr.rel (0) target = $region37
    $region36: #{seq_model_forward.1} parent=1 // pred_region
      _
    $region37: #{seq_model_forward.1} parent=1 // pred_fallthru
      _
    // Predicated region
    $region38: #{seq_model_forward.1} parent=1 // pred_check
      _
    $region39: #{seq_model_forward.1} parent=1 // pred_check_branch
      %46 = sbr.rel (0) target = $region41
    $region40: #{seq_model_forward.1} parent=1 // pred_region
      _
    $region41: #{seq_model_forward.1} parent=1 // pred_fallthru
      _
    // Predicated region
    $region42: #{seq_model_forward.1} parent=1 // pred_check
      _
    $region43: #{seq_model_forward.1} parent=1 // pred_check_branch
      %48 = sbr.rel (0) target = $region45
    $region44: #{seq_model_forward.1} parent=1 // pred_region
      %50 = dma.done [#allocation4], 2048
    $region45: #{seq_model_forward.1} parent=1 // pred_fallthru
      _
    %v52 = vlaneseq
    %v53 = vand.u32 %v52, 127
    %v54 = vld [vmem:[%s0] sm:$0xff]
    %v55 = vld [vmem:[%s0 + $0x8] sm:$0xff]
    %v56 = vld [vmem:[%s0 + $0x10] sm:$0xff]
    %v57 = vld [vmem:[%s0 + $0x18] sm:$0xff]
    %v58 = vld [vmem:[%s0 + $0x20] sm:$0xff]
    %v59 = vld [vmem:[%s0 + $0x28] sm:$0xff]
    %v60 = vld [vmem:[%s0 + $0x30] sm:$0xff]
    %v61 = vld [vmem:[%s0 + $0x38] sm:$0xff]
    %62 = vset.pattern.permute.xlu0 0
    %63 = vperm.xlu0 %62, %v54
    %v64 = vpop.permute.xlu0 %63
    %65 = vset.pattern.permute.xlu0 0
    %66 = vperm.xlu0 %65, %v55
    %v67 = vpop.permute.xlu0 %66
    %68 = vset.pattern.permute.xlu0 0
    %69 = vperm.xlu0 %68, %v56
    %v70 = vpop.permute.xlu0 %69
    %71 = vset.pattern.permute.xlu0 0
    %72 = vperm.xlu0 %71, %v57
    %v73 = vpop.permute.xlu0 %72
    %74 = vset.pattern.permute.xlu0 0
    %75 = vperm.xlu0 %74, %v58
    %v76 = vpop.permute.xlu0 %75
    %77 = vset.pattern.permute.xlu0 0
    %78 = vperm.xlu0 %77, %v59
    %v79 = vpop.permute.xlu0 %78
    %80 = vset.pattern.permute.xlu0 0
    %81 = vperm.xlu0 %80, %v60
    %v82 = vpop.permute.xlu0 %81
    %83 = vset.pattern.permute.xlu0 0
    %84 = vperm.xlu0 %83, %v61
    %v85 = vpop.permute.xlu0 %84
    %vm86 = vcmp.eq.s32.totalorder %v64, %v53
    %vm87 = vcmp.eq.s32.totalorder %v67, %v53
    %vm88 = vcmp.eq.s32.totalorder %v70, %v53
    %vm89 = vcmp.eq.s32.totalorder %v73, %v53
    %vm90 = vcmp.eq.s32.totalorder %v76, %v53
    %vm91 = vcmp.eq.s32.totalorder %v79, %v53
    %vm92 = vcmp.eq.s32.totalorder %v82, %v53
    %vm93 = vcmp.eq.s32.totalorder %v85, %v53
    %v94 = vsel %vm86, 1, 0
    %v95 = vsel %vm87, 1, 0
    %v96 = vsel %vm88, 1, 0
    %v97 = vsel %vm89, 1, 0
    %v98 = vsel %vm90, 1, 0
    %v99 = vsel %vm91, 1, 0
    %v100 = vsel %vm92, 1, 0
    %v101 = vsel %vm93, 1, 0
    %v102 = vcvt.s32.f32 %v94
    %v103 = vcvt.s32.f32 %v95
    %v104 = vcvt.s32.f32 %v96
    %v105 = vcvt.s32.f32 %v97
    %v106 = vcvt.s32.f32 %v98
    %v107 = vcvt.s32.f32 %v99
    %v108 = vcvt.s32.f32 %v100
    %v109 = vcvt.s32.f32 %v101
    %v110 = vpack.c.bf16 %v103, %v102
    %v111 = vpack.c.bf16 %v105, %v104
    %v112 = vpack.c.bf16 %v107, %v106
    %v113 = vpack.c.bf16 %v109, %v108
    %v114 = vld [vmem:[%s1] sm:$0xff]
    %v115 = vld [vmem:[%s1 + $0x8] sm:$0xff]
    %v116 = vld [vmem:[%s1 + $0x10] sm:$0xff]
    %v117 = vld [vmem:[%s1 + $0x18] sm:$0xff]
    %v118 = vld [vmem:[%s1 + $0x20] sm:$0xff]
    %v119 = vld [vmem:[%s1 + $0x28] sm:$0xff]
    %v120 = vld [vmem:[%s1 + $0x30] sm:$0xff]
    %v121 = vld [vmem:[%s1 + $0x38] sm:$0xff]
    %122 = vset.pattern.permute.xlu0 0
    %123 = vperm.xlu0 %122, %v114
    %v124 = vpop.permute.xlu0 %123
    %125 = vset.pattern.permute.xlu0 0
    %126 = vperm.xlu0 %125, %v115
    %v127 = vpop.permute.xlu0 %126
    %128 = vset.pattern.permute.xlu0 0
    %129 = vperm.xlu0 %128, %v116
    %v130 = vpop.permute.xlu0 %129
    %131 = vset.pattern.permute.xlu0 0
    %132 = vperm.xlu0 %131, %v117
    %v133 = vpop.permute.xlu0 %132
    %134 = vset.pattern.permute.xlu0 0
    %135 = vperm.xlu0 %134, %v118
    %v136 = vpop.permute.xlu0 %135
    %137 = vset.pattern.permute.xlu0 0
    %138 = vperm.xlu0 %137, %v119
    %v139 = vpop.permute.xlu0 %138
    %140 = vset.pattern.permute.xlu0 0
    %141 = vperm.xlu0 %140, %v120
    %v142 = vpop.permute.xlu0 %141
    %143 = vset.pattern.permute.xlu0 0
    %144 = vperm.xlu0 %143, %v121
    %v145 = vpop.permute.xlu0 %144
    %vm146 = vcmp.eq.s32.totalorder %v124, %v53
    %vm147 = vcmp.eq.s32.totalorder %v127, %v53
    %vm148 = vcmp.eq.s32.totalorder %v130, %v53
    %vm149 = vcmp.eq.s32.totalorder %v133, %v53
    %vm150 = vcmp.eq.s32.totalorder %v136, %v53
    %vm151 = vcmp.eq.s32.totalorder %v139, %v53
    %vm152 = vcmp.eq.s32.totalorder %v142, %v53
    %vm153 = vcmp.eq.s32.totalorder %v145, %v53
    %v154 = vsel %vm146, 1, 0
    %v155 = vsel %vm147, 1, 0
    %v156 = vsel %vm148, 1, 0
    %v157 = vsel %vm149, 1, 0
    %v158 = vsel %vm150, 1, 0
    %v159 = vsel %vm151, 1, 0
    %v160 = vsel %vm152, 1, 0
    %v161 = vsel %vm153, 1, 0
    %v162 = vcvt.s32.f32 %v154
    %v163 = vcvt.s32.f32 %v155
    %v164 = vcvt.s32.f32 %v156
    %v165 = vcvt.s32.f32 %v157
    %v166 = vcvt.s32.f32 %v158
    %v167 = vcvt.s32.f32 %v159
    %v168 = vcvt.s32.f32 %v160
    %v169 = vcvt.s32.f32 %v161
    %v170 = vpack.c.bf16 %v163, %v162
    %v171 = vpack.c.bf16 %v165, %v164
    %v172 = vpack.c.bf16 %v167, %v166
    %v173 = vpack.c.bf16 %v169, %v168
    %v174 = vld [vmem:[%s2] sm:$0xff]
    %v175 = vld [vmem:[%s2 + $0x8] sm:$0xff]
    %v176 = vld [vmem:[%s2 + $0x10] sm:$0xff]
    %v177 = vld [vmem:[%s2 + $0x18] sm:$0xff]
    %v178 = vld [vmem:[%s2 + $0x20] sm:$0xff]
    %v179 = vld [vmem:[%s2 + $0x28] sm:$0xff]
    %v180 = vld [vmem:[%s2 + $0x30] sm:$0xff]
    %v181 = vld [vmem:[%s2 + $0x38] sm:$0xff]
    %v182 = vld [vmem:[%s2 + $0x40] sm:$0xff]
    %v183 = vld [vmem:[%s2 + $0x48] sm:$0xff]
    %v184 = vld [vmem:[%s2 + $0x50] sm:$0xff]
    %v185 = vld [vmem:[%s2 + $0x58] sm:$0xff]
    %v186 = vld [vmem:[%s2 + $0x60] sm:$0xff]
    %v187 = vld [vmem:[%s2 + $0x68] sm:$0xff]
    %v188 = vld [vmem:[%s2 + $0x70] sm:$0xff]
    %v189 = vld [vmem:[%s2 + $0x78] sm:$0xff]
    %v190 = vld [vmem:[%s3] sm:$0xff]
    %v191 = vld [vmem:[%s3 + $0x8] sm:$0xff]
    %v192 = vld [vmem:[%s3 + $0x10] sm:$0xff]
    %v193 = vld [vmem:[%s3 + $0x18] sm:$0xff]
    %v194 = vld [vmem:[%s3 + $0x20] sm:$0xff]
    %v195 = vld [vmem:[%s3 + $0x28] sm:$0xff]
    %v196 = vld [vmem:[%s3 + $0x30] sm:$0xff]
    %v197 = vld [vmem:[%s3 + $0x38] sm:$0xff]
    %v198 = vld [vmem:[%s3 + $0x40] sm:$0xff]
    %v199 = vld [vmem:[%s3 + $0x48] sm:$0xff]
    %v200 = vld [vmem:[%s3 + $0x50] sm:$0xff]
    %v201 = vld [vmem:[%s3 + $0x58] sm:$0xff]
    %v202 = vld [vmem:[%s3 + $0x60] sm:$0xff]
    %v203 = vld [vmem:[%s3 + $0x68] sm:$0xff]
    %v204 = vld [vmem:[%s3 + $0x70] sm:$0xff]
    %v205 = vld [vmem:[%s3 + $0x78] sm:$0xff]
    %v222 = vunpack.c.l.b16 %v190
    %v223 = vunpack.c.h.b16 %v190
    %v224 = vunpack.c.l.b16 %v191
    %v225 = vunpack.c.h.b16 %v191
    %v226 = vunpack.c.l.b16 %v192
    %v227 = vunpack.c.h.b16 %v192
    %v228 = vunpack.c.l.b16 %v193
    %v229 = vunpack.c.h.b16 %v193
    %v230 = vunpack.c.l.b16 %v194
    %v231 = vunpack.c.h.b16 %v194
    %v232 = vunpack.c.l.b16 %v195
    %v233 = vunpack.c.h.b16 %v195
    %v234 = vunpack.c.l.b16 %v196
    %v235 = vunpack.c.h.b16 %v196
    %v236 = vunpack.c.l.b16 %v197
    %v237 = vunpack.c.h.b16 %v197
    %v238 = vunpack.c.l.b16 %v198
    %v239 = vunpack.c.h.b16 %v198
    %v240 = vunpack.c.l.b16 %v199
    %v241 = vunpack.c.h.b16 %v199
    %v242 = vunpack.c.l.b16 %v200
    %v243 = vunpack.c.h.b16 %v200
    %v244 = vunpack.c.l.b16 %v201
    %v245 = vunpack.c.h.b16 %v201
    %v246 = vunpack.c.l.b16 %v202
    %v247 = vunpack.c.h.b16 %v202
    %v248 = vunpack.c.l.b16 %v203
    %v249 = vunpack.c.h.b16 %v203
    %v250 = vunpack.c.l.b16 %v204
    %v251 = vunpack.c.h.b16 %v204
    %v252 = vunpack.c.l.b16 %v205
    %v253 = vunpack.c.h.b16 %v205
    %v254 = vpack.c.b16 %v224, %v222
    %v255 = vpack.c.b16 %v225, %v223
    %v256 = vpack.c.b16 %v228, %v226
    %v257 = vpack.c.b16 %v229, %v227
    %v258 = vpack.c.b16 %v232, %v230
    %v259 = vpack.c.b16 %v233, %v231
    %v260 = vpack.c.b16 %v236, %v234
    %v261 = vpack.c.b16 %v237, %v235
    %v262 = vpack.c.b16 %v240, %v238
    %v263 = vpack.c.b16 %v241, %v239
    %v264 = vpack.c.b16 %v244, %v242
    %v265 = vpack.c.b16 %v245, %v243
    %v266 = vpack.c.b16 %v248, %v246
    %v267 = vpack.c.b16 %v249, %v247
    %v268 = vpack.c.b16 %v252, %v250
    %v269 = vpack.c.b16 %v253, %v251
    %286 = vmatpush.bf16.msra.mxu0 %v268
    %287 = vmatpush.bf16.msra.mxu0 %v266
    %288 = vmatpush.bf16.msra.mxu0 %v264
    %289 = vmatpush.bf16.msra.mxu0 %v262
    %290 = vmatpush.bf16.msra.mxu0 %v260
    %291 = vmatpush.bf16.msra.mxu0 %v258
    %292 = vmatpush.bf16.msra.mxu0 %v256
    %293 = vmatpush.bf16.msra.mxu0 %v254
    %294 = vmatmul.bf16.gmra.mxu0 %v170
    %v295 = vpop.f32.mrf.mxu0
    %v296 = vadd.f32 0.0, %v295
    %v297 = vpop.f32.mrf.mxu0
    %v298 = vadd.f32 0.0, %v297
    %299 = vmatmul.bf16.gmra.mxu0 %v171
    %v300 = vpop.f32.mrf.mxu0
    %v301 = vadd.f32 0.0, %v300
    %v302 = vpop.f32.mrf.mxu0
    %v303 = vadd.f32 0.0, %v302
    %304 = vmatmul.bf16.gmra.mxu0 %v172
    %v305 = vpop.f32.mrf.mxu0
    %v306 = vadd.f32 0.0, %v305
    %v307 = vpop.f32.mrf.mxu0
    %v308 = vadd.f32 0.0, %v307
    %309 = vmatmul.bf16.gmra.mxu0 %v173
    %v310 = vpop.f32.mrf.mxu0
    %v311 = vadd.f32 0.0, %v310
    %v312 = vpop.f32.mrf.mxu0
    %v313 = vadd.f32 0.0, %v312
    %314 = vdwg.mxu0
    %315 = vmatpush.bf16.msra.mxu0 %v269
    %316 = vmatpush.bf16.msra.mxu0 %v267
    %317 = vmatpush.bf16.msra.mxu0 %v265
    %318 = vmatpush.bf16.msra.mxu0 %v263
    %319 = vmatpush.bf16.msra.mxu0 %v261
    %320 = vmatpush.bf16.msra.mxu0 %v259
    %321 = vmatpush.bf16.msra.mxu0 %v257
    %322 = vmatpush.bf16.msra.mxu0 %v255
    %323 = vmatmul.bf16.gmra.mxu0 %v170
    %v324 = vpop.f32.mrf.mxu0
    %v325 = vadd.f32 0.0, %v324
    %v326 = vpop.f32.mrf.mxu0
    %v327 = vadd.f32 0.0, %v326
    %328 = vmatmul.bf16.gmra.mxu0 %v171
    %v329 = vpop.f32.mrf.mxu0
    %v330 = vadd.f32 0.0, %v329
    %v331 = vpop.f32.mrf.mxu0
    %v332 = vadd.f32 0.0, %v331
    %333 = vmatmul.bf16.gmra.mxu0 %v172
    %v334 = vpop.f32.mrf.mxu0
    %v335 = vadd.f32 0.0, %v334
    %v336 = vpop.f32.mrf.mxu0
    %v337 = vadd.f32 0.0, %v336
    %338 = vmatmul.bf16.gmra.mxu0 %v173
    %v339 = vpop.f32.mrf.mxu0
    %v340 = vadd.f32 0.0, %v339
    %v341 = vpop.f32.mrf.mxu0
    %v342 = vadd.f32 0.0, %v341
    %343 = vdwg.mxu0
    %v360 = vunpack.c.l.b16 %v174
    %v361 = vunpack.c.h.b16 %v174
    %v362 = vunpack.c.l.b16 %v175
    %v363 = vunpack.c.h.b16 %v175
    %v364 = vunpack.c.l.b16 %v176
    %v365 = vunpack.c.h.b16 %v176
    %v366 = vunpack.c.l.b16 %v177
    %v367 = vunpack.c.h.b16 %v177
    %v368 = vunpack.c.l.b16 %v178
    %v369 = vunpack.c.h.b16 %v178
    %v370 = vunpack.c.l.b16 %v179
    %v371 = vunpack.c.h.b16 %v179
    %v372 = vunpack.c.l.b16 %v180
    %v373 = vunpack.c.h.b16 %v180
    %v374 = vunpack.c.l.b16 %v181
    %v375 = vunpack.c.h.b16 %v181
    %v376 = vunpack.c.l.b16 %v182
    %v377 = vunpack.c.h.b16 %v182
    %v378 = vunpack.c.l.b16 %v183
    %v379 = vunpack.c.h.b16 %v183
    %v380 = vunpack.c.l.b16 %v184
    %v381 = vunpack.c.h.b16 %v184
    %v382 = vunpack.c.l.b16 %v185
    %v383 = vunpack.c.h.b16 %v185
    %v384 = vunpack.c.l.b16 %v186
    %v385 = vunpack.c.h.b16 %v186
    %v386 = vunpack.c.l.b16 %v187
    %v387 = vunpack.c.h.b16 %v187
    %v388 = vunpack.c.l.b16 %v188
    %v389 = vunpack.c.h.b16 %v188
    %v390 = vunpack.c.l.b16 %v189
    %v391 = vunpack.c.h.b16 %v189
    %v392 = vpack.c.b16 %v362, %v360
    %v393 = vpack.c.b16 %v363, %v361
    %v394 = vpack.c.b16 %v366, %v364
    %v395 = vpack.c.b16 %v367, %v365
    %v396 = vpack.c.b16 %v370, %v368
    %v397 = vpack.c.b16 %v371, %v369
    %v398 = vpack.c.b16 %v374, %v372
    %v399 = vpack.c.b16 %v375, %v373
    %v400 = vpack.c.b16 %v378, %v376
    %v401 = vpack.c.b16 %v379, %v377
    %v402 = vpack.c.b16 %v382, %v380
    %v403 = vpack.c.b16 %v383, %v381
    %v404 = vpack.c.b16 %v386, %v384
    %v405 = vpack.c.b16 %v387, %v385
    %v406 = vpack.c.b16 %v390, %v388
    %v407 = vpack.c.b16 %v391, %v389
    %424 = vmatpush.bf16.msra.mxu0 %v406
    %425 = vmatpush.bf16.msra.mxu0 %v404
    %426 = vmatpush.bf16.msra.mxu0 %v402
    %427 = vmatpush.bf16.msra.mxu0 %v400
    %428 = vmatpush.bf16.msra.mxu0 %v398
    %429 = vmatpush.bf16.msra.mxu0 %v396
    %430 = vmatpush.bf16.msra.mxu0 %v394
    %431 = vmatpush.bf16.msra.mxu0 %v392
    %432 = vmatmul.bf16.gmra.mxu0 %v110
    %v433 = vpop.f32.mrf.mxu0
    %v434 = vadd.f32 %v296, %v433
    %v435 = vpop.f32.mrf.mxu0
    %v436 = vadd.f32 %v298, %v435
    %437 = vmatmul.bf16.gmra.mxu0 %v111
    %v438 = vpop.f32.mrf.mxu0
    %v439 = vadd.f32 %v301, %v438
    %v440 = vpop.f32.mrf.mxu0
    %v441 = vadd.f32 %v303, %v440
    %442 = vmatmul.bf16.gmra.mxu0 %v112
    %v443 = vpop.f32.mrf.mxu0
    %v444 = vadd.f32 %v306, %v443
    %v445 = vpop.f32.mrf.mxu0
    %v446 = vadd.f32 %v308, %v445
    %447 = vmatmul.bf16.gmra.mxu0 %v113
    %v448 = vpop.f32.mrf.mxu0
    %v449 = vadd.f32 %v311, %v448
    %v450 = vpop.f32.mrf.mxu0
    %v451 = vadd.f32 %v313, %v450
    %452 = vdwg.mxu0
    %453 = vmatpush.bf16.msra.mxu0 %v407
    %454 = vmatpush.bf16.msra.mxu0 %v405
    %455 = vmatpush.bf16.msra.mxu0 %v403
    %456 = vmatpush.bf16.msra.mxu0 %v401
    %457 = vmatpush.bf16.msra.mxu0 %v399
    %458 = vmatpush.bf16.msra.mxu0 %v397
    %459 = vmatpush.bf16.msra.mxu0 %v395
    %460 = vmatpush.bf16.msra.mxu0 %v393
    %461 = vmatmul.bf16.gmra.mxu0 %v110
    %v462 = vpop.f32.mrf.mxu0
    %v463 = vadd.f32 %v325, %v462
    %v464 = vpop.f32.mrf.mxu0
    %v465 = vadd.f32 %v327, %v464
    %466 = vmatmul.bf16.gmra.mxu0 %v111
    %v467 = vpop.f32.mrf.mxu0
    %v468 = vadd.f32 %v330, %v467
    %v469 = vpop.f32.mrf.mxu0
    %v470 = vadd.f32 %v332, %v469
    %471 = vmatmul.bf16.gmra.mxu0 %v112
    %v472 = vpop.f32.mrf.mxu0
    %v473 = vadd.f32 %v335, %v472
    %v474 = vpop.f32.mrf.mxu0
    %v475 = vadd.f32 %v337, %v474
    %476 = vmatmul.bf16.gmra.mxu0 %v113
    %v477 = vpop.f32.mrf.mxu0
    %v478 = vadd.f32 %v340, %v477
    %v479 = vpop.f32.mrf.mxu0
    %v480 = vadd.f32 %v342, %v479
    %481 = vdwg.mxu0
    %482 = vst [vmem:[#allocation2] sm:$0xff] %v434
    %483 = vst [vmem:[#allocation2 + $0x8] sm:$0xff] %v463
    %484 = vst [vmem:[#allocation2 + $0x10] sm:$0xff] %v436
    %485 = vst [vmem:[#allocation2 + $0x18] sm:$0xff] %v465
    %486 = vst [vmem:[#allocation2 + $0x20] sm:$0xff] %v439
    %487 = vst [vmem:[#allocation2 + $0x28] sm:$0xff] %v468
    %488 = vst [vmem:[#allocation2 + $0x30] sm:$0xff] %v441
    %489 = vst [vmem:[#allocation2 + $0x38] sm:$0xff] %v470
    %490 = vst [vmem:[#allocation2 + $0x40] sm:$0xff] %v444
    %491 = vst [vmem:[#allocation2 + $0x48] sm:$0xff] %v473
    %492 = vst [vmem:[#allocation2 + $0x50] sm:$0xff] %v446
    %493 = vst [vmem:[#allocation2 + $0x58] sm:$0xff] %v475
    %494 = vst [vmem:[#allocation2 + $0x60] sm:$0xff] %v449
    %495 = vst [vmem:[#allocation2 + $0x68] sm:$0xff] %v478
    %496 = vst [vmem:[#allocation2 + $0x70] sm:$0xff] %v451
    %497 = vst [vmem:[#allocation2 + $0x78] sm:$0xff] %v480
    %v498 = vld [vmem:[#allocation3] sm:$0xff]
    %v499 = vld [vmem:[#allocation3 + $0x8] sm:$0xff]
    %v500 = vld [vmem:[#allocation3 + $0x10] sm:$0xff]
    %v501 = vld [vmem:[#allocation3 + $0x18] sm:$0xff]
    %v502 = vld [vmem:[#allocation3 + $0x20] sm:$0xff]
    %v503 = vld [vmem:[#allocation3 + $0x28] sm:$0xff]
    %v504 = vld [vmem:[#allocation3 + $0x30] sm:$0xff]
    %v505 = vld [vmem:[#allocation3 + $0x38] sm:$0xff]
    %v506 = vld [vmem:[#allocation3 + $0x40] sm:$0xff]
    %v507 = vld [vmem:[#allocation3 + $0x48] sm:$0xff]
    %v508 = vld [vmem:[#allocation3 + $0x50] sm:$0xff]
    %v509 = vld [vmem:[#allocation3 + $0x58] sm:$0xff]
    %v510 = vld [vmem:[#allocation3 + $0x60] sm:$0xff]
    %v511 = vld [vmem:[#allocation3 + $0x68] sm:$0xff]
    %v512 = vld [vmem:[#allocation3 + $0x70] sm:$0xff]
    %v513 = vld [vmem:[#allocation3 + $0x78] sm:$0xff]
    %v514 = vld [vmem:[%s5] sm:$0xff]
    %v531 = vunpack.c.l.b16 %v498
    %v532 = vunpack.c.h.b16 %v498
    %v533 = vunpack.c.l.b16 %v499
    %v534 = vunpack.c.h.b16 %v499
    %v535 = vunpack.c.l.b16 %v500
    %v536 = vunpack.c.h.b16 %v500
    %v537 = vunpack.c.l.b16 %v501
    %v538 = vunpack.c.h.b16 %v501
    %v539 = vunpack.c.l.b16 %v502
    %v540 = vunpack.c.h.b16 %v502
    %v541 = vunpack.c.l.b16 %v503
    %v542 = vunpack.c.h.b16 %v503
    %v543 = vunpack.c.l.b16 %v504
    %v544 = vunpack.c.h.b16 %v504
    %v545 = vunpack.c.l.b16 %v505
    %v546 = vunpack.c.h.b16 %v505
    %v547 = vunpack.c.l.b16 %v506
    %v548 = vunpack.c.h.b16 %v506
    %v549 = vunpack.c.l.b16 %v507
    %v550 = vunpack.c.h.b16 %v507
    %v551 = vunpack.c.l.b16 %v508
    %v552 = vunpack.c.h.b16 %v508
    %v553 = vunpack.c.l.b16 %v509
    %v554 = vunpack.c.h.b16 %v509
    %v555 = vunpack.c.l.b16 %v510
    %v556 = vunpack.c.h.b16 %v510
    %v557 = vunpack.c.l.b16 %v511
    %v558 = vunpack.c.h.b16 %v511
    %v559 = vunpack.c.l.b16 %v512
    %v560 = vunpack.c.h.b16 %v512
    %v561 = vunpack.c.l.b16 %v513
    %v562 = vunpack.c.h.b16 %v513
    %v563 = vpack.c.b16 %v533, %v531
    %v564 = vpack.c.b16 %v534, %v532
    %v565 = vpack.c.b16 %v537, %v535
    %v566 = vpack.c.b16 %v538, %v536
    %v567 = vpack.c.b16 %v541, %v539
    %v568 = vpack.c.b16 %v542, %v540
    %v569 = vpack.c.b16 %v545, %v543
    %v570 = vpack.c.b16 %v546, %v544
    %v571 = vpack.c.b16 %v549, %v547
    %v572 = vpack.c.b16 %v550, %v548
    %v573 = vpack.c.b16 %v553, %v551
    %v574 = vpack.c.b16 %v554, %v552
    %v575 = vpack.c.b16 %v557, %v555
    %v576 = vpack.c.b16 %v558, %v556
    %v577 = vpack.c.b16 %v561, %v559
    %v578 = vpack.c.b16 %v562, %v560
    %595 = vmatpush.bf16.msra.mxu0 %v577
    %596 = vmatpush.bf16.msra.mxu0 %v575
    %597 = vmatpush.bf16.msra.mxu0 %v573
    %598 = vmatpush.bf16.msra.mxu0 %v571
    %599 = vmatpush.bf16.msra.mxu0 %v569
    %600 = vmatpush.bf16.msra.mxu0 %v567
    %601 = vmatpush.bf16.msra.mxu0 %v565
    %602 = vmatpush.bf16.msra.mxu0 %v563
    %603 = vmatmul.bf16.gmra.mxu0 0
    %v604 = vpop.f32.mrf.mxu0
    %v605 = vadd.f32 0.0, %v604
    %v606 = vpop.f32.mrf.mxu0
    %607 = vdwg.mxu0
    %608 = vmatpush.bf16.msra.mxu0 %v578
    %609 = vmatpush.bf16.msra.mxu0 %v576
    %610 = vmatpush.bf16.msra.mxu0 %v574
    %611 = vmatpush.bf16.msra.mxu0 %v572
    %612 = vmatpush.bf16.msra.mxu0 %v570
    %613 = vmatpush.bf16.msra.mxu0 %v568
    %614 = vmatpush.bf16.msra.mxu0 %v566
    %615 = vmatpush.bf16.msra.mxu0 %v564
    %616 = vmatmul.bf16.gmra.mxu0 0
    %v617 = vpop.f32.mrf.mxu0
    %v618 = vadd.f32 0.0, %v617
    %v619 = vpop.f32.mrf.mxu0
    %620 = vdwg.mxu0
    %v621 = vld [vmem:[#allocation2] sm:$0xff]
    %v622 = vld [vmem:[#allocation2 + $0x8] sm:$0xff]
    %v623 = vadd.f32 %v621, %v605
    %v624 = vadd.f32 %v622, %v618
    %v625 = vxor.u32 %v623, 2147483648
    %v626 = vxor.u32 %v624, 2147483648
    %v627 = vmul.f32 %v625, 1.442695
    %v628 = vpow.pop %v627
    %v629 = vmul.f32 %v626, 1.442695
    %v630 = vpow.pop %v629
    %v631 = vadd.f32 %v628, 1.0
    %v632 = vadd.f32 %v630, 1.0
    %v633 = vrcp.pop %v631
    %v634 = vmul.f32 %v631, %v633
    %v635 = vsub.f32 1.0, %v634
    %v636 = vmul.f32 %v633, %v635
    %v637 = vadd.f32 %v633, %v636
    %vm638 = vweird.f32 %v631
    %vm639 = vweird.f32 %v633
    %vm640 = vmor %vm638, %vm639
    %v641 = vsel %vm640, %v633, %v637
    %v642 = vand.u32 2147483647, %v631
    %vm643 = vcmp.eq.f32.partialorder %v642, 8.507059e+37
    %v644 = vand.u32 %v631, 2147483648
    %v645 = vor.u32 1.1754944e-38, %v644
    %v646 = vsel %vm643, %v645, %v641
    %v647 = vmul.f32 1.0, %v646
    %v648 = vrcp.pop %v632
    %v649 = vmul.f32 %v632, %v648
    %v650 = vsub.f32 1.0, %v649
    %v651 = vmul.f32 %v648, %v650
    %v652 = vadd.f32 %v648, %v651
    %vm653 = vweird.f32 %v632
    %vm654 = vweird.f32 %v648
    %vm655 = vmor %vm653, %vm654
    %v656 = vsel %vm655, %v648, %v652
    %v657 = vand.u32 2147483647, %v632
    %vm658 = vcmp.eq.f32.partialorder %v657, 8.507059e+37
    %v659 = vand.u32 %v632, 2147483648
    %v660 = vor.u32 1.1754944e-38, %v659
    %v661 = vsel %vm658, %v660, %v656
    %v662 = vmul.f32 1.0, %v661
    %v663 = vtanh.pop %v624
    %v664 = vmul.f32 %v647, 0.0
    %666 = vrot.lane.b32.xlu0 %v663, 64
    %v667 = vpop.permute.xlu0 %666
    %v669 = vmul.f32 %v647, %v667
    %671 = vrot.lane.b32.xlu0 %v669, 64
    %v672 = vpop.permute.xlu0 %671
    %v674 = vadd.f32 %v664, %v672
    %v675 = vtanh.pop %v674
    %677 = vrot.lane.b32.xlu0 %v675, 64
    %v678 = vpop.permute.xlu0 %677
    %v680 = vmul.f32 %v662, %v678
    %682 = vrot.lane.b32.xlu0 %v680, 64
    %v683 = vpop.permute.xlu0 %682
    %vm685 = vcmask 523264
    %v686 = vsel %vm685, %v680, %v683
    %v687 = vmul.f32 %v686, %v514
    %v688 = vpack.c.bf16 %v687, %v687
    %689 = vmatpush.bf16.msra.mxu0 %v577
    %690 = vmatpush.bf16.msra.mxu0 %v575
    %691 = vmatpush.bf16.msra.mxu0 %v573
    %692 = vmatpush.bf16.msra.mxu0 %v571
    %693 = vmatpush.bf16.msra.mxu0 %v569
    %694 = vmatpush.bf16.msra.mxu0 %v567
    %695 = vmatpush.bf16.msra.mxu0 %v565
    %696 = vmatpush.bf16.msra.mxu0 %v563
    %697 = vmatmul.bf16.gmra.mxu0 %v688
    %v698 = vpop.f32.mrf.mxu0
    %v699 = vadd.f32 0.0, %v698
    %v700 = vpop.f32.mrf.mxu0
    %701 = vdwg.mxu0
    %702 = vmatpush.bf16.msra.mxu0 %v578
    %703 = vmatpush.bf16.msra.mxu0 %v576
    %704 = vmatpush.bf16.msra.mxu0 %v574
    %705 = vmatpush.bf16.msra.mxu0 %v572
    %706 = vmatpush.bf16.msra.mxu0 %v570
    %707 = vmatpush.bf16.msra.mxu0 %v568
    %708 = vmatpush.bf16.msra.mxu0 %v566
    %709 = vmatpush.bf16.msra.mxu0 %v564
    %710 = vmatmul.bf16.gmra.mxu0 %v688
    %v711 = vpop.f32.mrf.mxu0
    %v712 = vadd.f32 0.0, %v711
    %v713 = vpop.f32.mrf.mxu0
    %714 = vdwg.mxu0
    %v715 = vld [vmem:[#allocation2 + $0x10] sm:$0xff]
    %v716 = vld [vmem:[#allocation2 + $0x18] sm:$0xff]
    %v717 = vadd.f32 %v715, %v699
    %v718 = vadd.f32 %v716, %v712
    %v719 = vxor.u32 %v717, 2147483648
    %v720 = vxor.u32 %v718, 2147483648
    %v721 = vmul.f32 %v719, 1.442695
    %v722 = vpow.pop %v721
    %v723 = vmul.f32 %v720, 1.442695
    %v724 = vpow.pop %v723
    %v725 = vadd.f32 %v722, 1.0
    %v726 = vadd.f32 %v724, 1.0
    %v727 = vrcp.pop %v725
    %v728 = vmul.f32 %v725, %v727
    %v729 = vsub.f32 1.0, %v728
    %v730 = vmul.f32 %v727, %v729
    %v731 = vadd.f32 %v727, %v730
    %vm732 = vweird.f32 %v725
    %vm733 = vweird.f32 %v727
    %vm734 = vmor %vm732, %vm733
    %v735 = vsel %vm734, %v727, %v731
    %v736 = vand.u32 2147483647, %v725
    %vm737 = vcmp.eq.f32.partialorder %v736, 8.507059e+37
    %v738 = vand.u32 %v725, 2147483648
    %v739 = vor.u32 1.1754944e-38, %v738
    %v740 = vsel %vm737, %v739, %v735
    %v741 = vmul.f32 1.0, %v740
    %v742 = vrcp.pop %v726
    %v743 = vmul.f32 %v726, %v742
    %v744 = vsub.f32 1.0, %v743
    %v745 = vmul.f32 %v742, %v744
    %v746 = vadd.f32 %v742, %v745
    %vm747 = vweird.f32 %v726
    %vm748 = vweird.f32 %v742
    %vm749 = vmor %vm747, %vm748
    %v750 = vsel %vm749, %v742, %v746
    %v751 = vand.u32 2147483647, %v726
    %vm752 = vcmp.eq.f32.partialorder %v751, 8.507059e+37
    %v753 = vand.u32 %v726, 2147483648
    %v754 = vor.u32 1.1754944e-38, %v753
    %v755 = vsel %vm752, %v754, %v750
    %v756 = vmul.f32 1.0, %v755
    %v757 = vtanh.pop %v718
    %v758 = vmul.f32 %v741, %v674
    %760 = vrot.lane.b32.xlu0 %v757, 64
    %v761 = vpop.permute.xlu0 %760
    %v763 = vmul.f32 %v741, %v761
    %765 = vrot.lane.b32.xlu0 %v763, 64
    %v766 = vpop.permute.xlu0 %765
    %v768 = vadd.f32 %v758, %v766
    %v769 = vtanh.pop %v768
    %771 = vrot.lane.b32.xlu0 %v769, 64
    %v772 = vpop.permute.xlu0 %771
    %v774 = vmul.f32 %v756, %v772
    %776 = vrot.lane.b32.xlu0 %v774, 64
    %v777 = vpop.permute.xlu0 %776
    %v779 = vsel %vm685, %v774, %v777
    %v780 = vmul.f32 %v779, %v514
    %v781 = vpack.c.bf16 %v780, %v780
    %782 = vmatpush.bf16.msra.mxu0 %v577
    %783 = vmatpush.bf16.msra.mxu0 %v575
    %784 = vmatpush.bf16.msra.mxu0 %v573
    %785 = vmatpush.bf16.msra.mxu0 %v571
    %786 = vmatpush.bf16.msra.mxu0 %v569
    %787 = vmatpush.bf16.msra.mxu0 %v567
    %788 = vmatpush.bf16.msra.mxu0 %v565
    %789 = vmatpush.bf16.msra.mxu0 %v563
    %790 = vmatmul.bf16.gmra.mxu0 %v781
    %v791 = vpop.f32.mrf.mxu0
    %v792 = vadd.f32 0.0, %v791
    %v793 = vpop.f32.mrf.mxu0
    %794 = vdwg.mxu0
    %795 = vmatpush.bf16.msra.mxu0 %v578
    %796 = vmatpush.bf16.msra.mxu0 %v576
    %797 = vmatpush.bf16.msra.mxu0 %v574
    %798 = vmatpush.bf16.msra.mxu0 %v572
    %799 = vmatpush.bf16.msra.mxu0 %v570
    %800 = vmatpush.bf16.msra.mxu0 %v568
    %801 = vmatpush.bf16.msra.mxu0 %v566
    %802 = vmatpush.bf16.msra.mxu0 %v564
    %803 = vmatmul.bf16.gmra.mxu0 %v781
    %v804 = vpop.f32.mrf.mxu0
    %v805 = vadd.f32 0.0, %v804
    %v806 = vpop.f32.mrf.mxu0
    %807 = vdwg.mxu0
    %v808 = vld [vmem:[#allocation2 + $0x20] sm:$0xff]
    %v809 = vld [vmem:[#allocation2 + $0x28] sm:$0xff]
    %v810 = vadd.f32 %v808, %v792
    %v811 = vadd.f32 %v809, %v805
    %v812 = vxor.u32 %v810, 2147483648
    %v813 = vxor.u32 %v811, 2147483648
    %v814 = vmul.f32 %v812, 1.442695
    %v815 = vpow.pop %v814
    %v816 = vmul.f32 %v813, 1.442695
    %v817 = vpow.pop %v816
    %v818 = vadd.f32 %v815, 1.0
    %v819 = vadd.f32 %v817, 1.0
    %v820 = vrcp.pop %v818
    %v821 = vmul.f32 %v818, %v820
    %v822 = vsub.f32 1.0, %v821
    %v823 = vmul.f32 %v820, %v822
    %v824 = vadd.f32 %v820, %v823
    %vm825 = vweird.f32 %v818
    %vm826 = vweird.f32 %v820
    %vm827 = vmor %vm825, %vm826
    %v828 = vsel %vm827, %v820, %v824
    %v829 = vand.u32 2147483647, %v818
    %vm830 = vcmp.eq.f32.partialorder %v829, 8.507059e+37
    %v831 = vand.u32 %v818, 2147483648
    %v832 = vor.u32 1.1754944e-38, %v831
    %v833 = vsel %vm830, %v832, %v828
    %v834 = vmul.f32 1.0, %v833
    %v835 = vrcp.pop %v819
    %v836 = vmul.f32 %v819, %v835
    %v837 = vsub.f32 1.0, %v836
    %v838 = vmul.f32 %v835, %v837
    %v839 = vadd.f32 %v835, %v838
    %vm840 = vweird.f32 %v819
    %vm841 = vweird.f32 %v835
    %vm842 = vmor %vm840, %vm841
    %v843 = vsel %vm842, %v835, %v839
    %v844 = vand.u32 2147483647, %v819
    %vm845 = vcmp.eq.f32.partialorder %v844, 8.507059e+37
    %v846 = vand.u32 %v819, 2147483648
    %v847 = vor.u32 1.1754944e-38, %v846
    %v848 = vsel %vm845, %v847, %v843
    %v849 = vmul.f32 1.0, %v848
    %v850 = vtanh.pop %v811
    %v851 = vmul.f32 %v834, %v768
    %853 = vrot.lane.b32.xlu0 %v850, 64
    %v854 = vpop.permute.xlu0 %853
    %v856 = vmul.f32 %v834, %v854
    %858 = vrot.lane.b32.xlu0 %v856, 64
    %v859 = vpop.permute.xlu0 %858
    %v861 = vadd.f32 %v851, %v859
    %v862 = vtanh.pop %v861
    %864 = vrot.lane.b32.xlu0 %v862, 64
    %v865 = vpop.permute.xlu0 %864
    %v867 = vmul.f32 %v849, %v865
    %869 = vrot.lane.b32.xlu0 %v867, 64
    %v870 = vpop.permute.xlu0 %869
    %v872 = vsel %vm685, %v867, %v870
    %v873 = vmul.f32 %v872, %v514
    %v874 = vpack.c.bf16 %v873, %v873
    %875 = vmatpush.bf16.msra.mxu0 %v577
    %876 = vmatpush.bf16.msra.mxu0 %v575
    %877 = vmatpush.bf16.msra.mxu0 %v573
    %878 = vmatpush.bf16.msra.mxu0 %v571
    %879 = vmatpush.bf16.msra.mxu0 %v569
    %880 = vmatpush.bf16.msra.mxu0 %v567
    %881 = vmatpush.bf16.msra.mxu0 %v565
    %882 = vmatpush.bf16.msra.mxu0 %v563
    %883 = vmatmul.bf16.gmra.mxu0 %v874
    %v884 = vpop.f32.mrf.mxu0
    %v885 = vadd.f32 0.0, %v884
    %v886 = vpop.f32.mrf.mxu0
    %887 = vdwg.mxu0
    %888 = vmatpush.bf16.msra.mxu0 %v578
    %889 = vmatpush.bf16.msra.mxu0 %v576
    %890 = vmatpush.bf16.msra.mxu0 %v574
    %891 = vmatpush.bf16.msra.mxu0 %v572
    %892 = vmatpush.bf16.msra.mxu0 %v570
    %893 = vmatpush.bf16.msra.mxu0 %v568
    %894 = vmatpush.bf16.msra.mxu0 %v566
    %895 = vmatpush.bf16.msra.mxu0 %v564
    %896 = vmatmul.bf16.gmra.mxu0 %v874
    %v897 = vpop.f32.mrf.mxu0
    %v898 = vadd.f32 0.0, %v897
    %v899 = vpop.f32.mrf.mxu0
    %900 = vdwg.mxu0
    %v901 = vld [vmem:[#allocation2 + $0x30] sm:$0xff]
    %v902 = vld [vmem:[#allocation2 + $0x38] sm:$0xff]
    %v903 = vadd.f32 %v901, %v885
    %v904 = vadd.f32 %v902, %v898
    %v905 = vxor.u32 %v903, 2147483648
    %v906 = vxor.u32 %v904, 2147483648
    %v907 = vmul.f32 %v905, 1.442695
    %v908 = vpow.pop %v907
    %v909 = vmul.f32 %v906, 1.442695
    %v910 = vpow.pop %v909
    %v911 = vadd.f32 %v908, 1.0
    %v912 = vadd.f32 %v910, 1.0
    %v913 = vrcp.pop %v911
    %v914 = vmul.f32 %v911, %v913
    %v915 = vsub.f32 1.0, %v914
    %v916 = vmul.f32 %v913, %v915
    %v917 = vadd.f32 %v913, %v916
    %vm918 = vweird.f32 %v911
    %vm919 = vweird.f32 %v913
    %vm920 = vmor %vm918, %vm919
    %v921 = vsel %vm920, %v913, %v917
    %v922 = vand.u32 2147483647, %v911
    %vm923 = vcmp.eq.f32.partialorder %v922, 8.507059e+37
    %v924 = vand.u32 %v911, 2147483648
    %v925 = vor.u32 1.1754944e-38, %v924
    %v926 = vsel %vm923, %v925, %v921
    %v927 = vmul.f32 1.0, %v926
    %v928 = vrcp.pop %v912
    %v929 = vmul.f32 %v912, %v928
    %v930 = vsub.f32 1.0, %v929
    %v931 = vmul.f32 %v928, %v930
    %v932 = vadd.f32 %v928, %v931
    %vm933 = vweird.f32 %v912
    %vm934 = vweird.f32 %v928
    %vm935 = vmor %vm933, %vm934
    %v936 = vsel %vm935, %v928, %v932
    %v937 = vand.u32 2147483647, %v912
    %vm938 = vcmp.eq.f32.partialorder %v937, 8.507059e+37
    %v939 = vand.u32 %v912, 2147483648
    %v940 = vor.u32 1.1754944e-38, %v939
    %v941 = vsel %vm938, %v940, %v936
    %v942 = vmul.f32 1.0, %v941
    %v943 = vtanh.pop %v904
    %v944 = vmul.f32 %v927, %v861
    %946 = vrot.lane.b32.xlu0 %v943, 64
    %v947 = vpop.permute.xlu0 %946
    %v949 = vmul.f32 %v927, %v947
    %951 = vrot.lane.b32.xlu0 %v949, 64
    %v952 = vpop.permute.xlu0 %951
    %v954 = vadd.f32 %v944, %v952
    %v955 = vtanh.pop %v954
    %957 = vrot.lane.b32.xlu0 %v955, 64
    %v958 = vpop.permute.xlu0 %957
    %v960 = vmul.f32 %v942, %v958
    %962 = vrot.lane.b32.xlu0 %v960, 64
    %v963 = vpop.permute.xlu0 %962
    %v965 = vsel %vm685, %v960, %v963
    %v966 = vmul.f32 %v965, %v514
    %v967 = vpack.c.bf16 %v966, %v966
    %968 = vmatpush.bf16.msra.mxu0 %v577
    %969 = vmatpush.bf16.msra.mxu0 %v575
    %970 = vmatpush.bf16.msra.mxu0 %v573
    %971 = vmatpush.bf16.msra.mxu0 %v571
    %972 = vmatpush.bf16.msra.mxu0 %v569
    %973 = vmatpush.bf16.msra.mxu0 %v567
    %974 = vmatpush.bf16.msra.mxu0 %v565
    %975 = vmatpush.bf16.msra.mxu0 %v563
    %976 = vmatmul.bf16.gmra.mxu0 %v967
    %v977 = vpop.f32.mrf.mxu0
    %v978 = vadd.f32 0.0, %v977
    %v979 = vpop.f32.mrf.mxu0
    %980 = vdwg.mxu0
    %981 = vmatpush.bf16.msra.mxu0 %v578
    %982 = vmatpush.bf16.msra.mxu0 %v576
    %983 = vmatpush.bf16.msra.mxu0 %v574
    %984 = vmatpush.bf16.msra.mxu0 %v572
    %985 = vmatpush.bf16.msra.mxu0 %v570
    %986 = vmatpush.bf16.msra.mxu0 %v568
    %987 = vmatpush.bf16.msra.mxu0 %v566
    %988 = vmatpush.bf16.msra.mxu0 %v564
    %989 = vmatmul.bf16.gmra.mxu0 %v967
    %v990 = vpop.f32.mrf.mxu0
    %v991 = vadd.f32 0.0, %v990
    %v992 = vpop.f32.mrf.mxu0
    %993 = vdwg.mxu0
    %v994 = vld [vmem:[#allocation2 + $0x40] sm:$0xff]
    %v995 = vld [vmem:[#allocation2 + $0x48] sm:$0xff]
    %v996 = vadd.f32 %v994, %v978
    %v997 = vadd.f32 %v995, %v991
    %v998 = vxor.u32 %v996, 2147483648
    %v999 = vxor.u32 %v997, 2147483648
    %v1000 = vmul.f32 %v998, 1.442695
    %v1001 = vpow.pop %v1000
    %v1002 = vmul.f32 %v999, 1.442695
    %v1003 = vpow.pop %v1002
    %v1004 = vadd.f32 %v1001, 1.0
    %v1005 = vadd.f32 %v1003, 1.0
    %v1006 = vrcp.pop %v1004
    %v1007 = vmul.f32 %v1004, %v1006
    %v1008 = vsub.f32 1.0, %v1007
    %v1009 = vmul.f32 %v1006, %v1008
    %v1010 = vadd.f32 %v1006, %v1009
    %vm1011 = vweird.f32 %v1004
    %vm1012 = vweird.f32 %v1006
    %vm1013 = vmor %vm1011, %vm1012
    %v1014 = vsel %vm1013, %v1006, %v1010
    %v1015 = vand.u32 2147483647, %v1004
    %vm1016 = vcmp.eq.f32.partialorder %v1015, 8.507059e+37
    %v1017 = vand.u32 %v1004, 2147483648
    %v1018 = vor.u32 1.1754944e-38, %v1017
    %v1019 = vsel %vm1016, %v1018, %v1014
    %v1020 = vmul.f32 1.0, %v1019
    %v1021 = vrcp.pop %v1005
    %v1022 = vmul.f32 %v1005, %v1021
    %v1023 = vsub.f32 1.0, %v1022
    %v1024 = vmul.f32 %v1021, %v1023
    %v1025 = vadd.f32 %v1021, %v1024
    %vm1026 = vweird.f32 %v1005
    %vm1027 = vweird.f32 %v1021
    %vm1028 = vmor %vm1026, %vm1027
    %v1029 = vsel %vm1028, %v1021, %v1025
    %v1030 = vand.u32 2147483647, %v1005
    %vm1031 = vcmp.eq.f32.partialorder %v1030, 8.507059e+37
    %v1032 = vand.u32 %v1005, 2147483648
    %v1033 = vor.u32 1.1754944e-38, %v1032
    %v1034 = vsel %vm1031, %v1033, %v1029
    %v1035 = vmul.f32 1.0, %v1034
    %v1036 = vtanh.pop %v997
    %v1037 = vmul.f32 %v1020, %v954
    %1039 = vrot.lane.b32.xlu0 %v1036, 64
    %v1040 = vpop.permute.xlu0 %1039
    %v1042 = vmul.f32 %v1020, %v1040
    %1044 = vrot.lane.b32.xlu0 %v1042, 64
    %v1045 = vpop.permute.xlu0 %1044
    %v1047 = vadd.f32 %v1037, %v1045
    %v1048 = vtanh.pop %v1047
    %1050 = vrot.lane.b32.xlu0 %v1048, 64
    %v1051 = vpop.permute.xlu0 %1050
    %v1053 = vmul.f32 %v1035, %v1051
    %1055 = vrot.lane.b32.xlu0 %v1053, 64
    %v1056 = vpop.permute.xlu0 %1055
    %v1058 = vsel %vm685, %v1053, %v1056
    %v1059 = vmul.f32 %v1058, %v514
    %v1060 = vpack.c.bf16 %v1059, %v1059
    %1061 = vmatpush.bf16.msra.mxu0 %v577
    %1062 = vmatpush.bf16.msra.mxu0 %v575
    %1063 = vmatpush.bf16.msra.mxu0 %v573
    %1064 = vmatpush.bf16.msra.mxu0 %v571
    %1065 = vmatpush.bf16.msra.mxu0 %v569
    %1066 = vmatpush.bf16.msra.mxu0 %v567
    %1067 = vmatpush.bf16.msra.mxu0 %v565
    %1068 = vmatpush.bf16.msra.mxu0 %v563
    %1069 = vmatmul.bf16.gmra.mxu0 %v1060
    %v1070 = vpop.f32.mrf.mxu0
    %v1071 = vadd.f32 0.0, %v1070
    %v1072 = vpop.f32.mrf.mxu0
    %1073 = vdwg.mxu0
    %1074 = vmatpush.bf16.msra.mxu0 %v578
    %1075 = vmatpush.bf16.msra.mxu0 %v576
    %1076 = vmatpush.bf16.msra.mxu0 %v574
    %1077 = vmatpush.bf16.msra.mxu0 %v572
    %1078 = vmatpush.bf16.msra.mxu0 %v570
    %1079 = vmatpush.bf16.msra.mxu0 %v568
    %1080 = vmatpush.bf16.msra.mxu0 %v566
    %1081 = vmatpush.bf16.msra.mxu0 %v564
    %1082 = vmatmul.bf16.gmra.mxu0 %v1060
    %v1083 = vpop.f32.mrf.mxu0
    %v1084 = vadd.f32 0.0, %v1083
    %v1085 = vpop.f32.mrf.mxu0
    %1086 = vdwg.mxu0
    %v1087 = vld [vmem:[#allocation2 + $0x50] sm:$0xff]
    %v1088 = vld [vmem:[#allocation2 + $0x58] sm:$0xff]
    %v1089 = vadd.f32 %v1087, %v1071
    %v1090 = vadd.f32 %v1088, %v1084
    %v1091 = vxor.u32 %v1089, 2147483648
    %v1092 = vxor.u32 %v1090, 2147483648
    %v1093 = vmul.f32 %v1091, 1.442695
    %v1094 = vpow.pop %v1093
    %v1095 = vmul.f32 %v1092, 1.442695
    %v1096 = vpow.pop %v1095
    %v1097 = vadd.f32 %v1094, 1.0
    %v1098 = vadd.f32 %v1096, 1.0
    %v1099 = vrcp.pop %v1097
    %v1100 = vmul.f32 %v1097, %v1099
    %v1101 = vsub.f32 1.0, %v1100
    %v1102 = vmul.f32 %v1099, %v1101
    %v1103 = vadd.f32 %v1099, %v1102
    %vm1104 = vweird.f32 %v1097
    %vm1105 = vweird.f32 %v1099
    %vm1106 = vmor %vm1104, %vm1105
    %v1107 = vsel %vm1106, %v1099, %v1103
    %v1108 = vand.u32 2147483647, %v1097
    %vm1109 = vcmp.eq.f32.partialorder %v1108, 8.507059e+37
    %v1110 = vand.u32 %v1097, 2147483648
    %v1111 = vor.u32 1.1754944e-38, %v1110
    %v1112 = vsel %vm1109, %v1111, %v1107
    %v1113 = vmul.f32 1.0, %v1112
    %v1114 = vrcp.pop %v1098
    %v1115 = vmul.f32 %v1098, %v1114
    %v1116 = vsub.f32 1.0, %v1115
    %v1117 = vmul.f32 %v1114, %v1116
    %v1118 = vadd.f32 %v1114, %v1117
    %vm1119 = vweird.f32 %v1098
    %vm1120 = vweird.f32 %v1114
    %vm1121 = vmor %vm1119, %vm1120
    %v1122 = vsel %vm1121, %v1114, %v1118
    %v1123 = vand.u32 2147483647, %v1098
    %vm1124 = vcmp.eq.f32.partialorder %v1123, 8.507059e+37
    %v1125 = vand.u32 %v1098, 2147483648
    %v1126 = vor.u32 1.1754944e-38, %v1125
    %v1127 = vsel %vm1124, %v1126, %v1122
    %v1128 = vmul.f32 1.0, %v1127
    %v1129 = vtanh.pop %v1090
    %v1130 = vmul.f32 %v1113, %v1047
    %1132 = vrot.lane.b32.xlu0 %v1129, 64
    %v1133 = vpop.permute.xlu0 %1132
    %v1135 = vmul.f32 %v1113, %v1133
    %1137 = vrot.lane.b32.xlu0 %v1135, 64
    %v1138 = vpop.permute.xlu0 %1137
    %v1140 = vadd.f32 %v1130, %v1138
    %v1141 = vtanh.pop %v1140
    %1143 = vrot.lane.b32.xlu0 %v1141, 64
    %v1144 = vpop.permute.xlu0 %1143
    %v1146 = vmul.f32 %v1128, %v1144
    %1148 = vrot.lane.b32.xlu0 %v1146, 64
    %v1149 = vpop.permute.xlu0 %1148
    %v1151 = vsel %vm685, %v1146, %v1149
    %v1152 = vmul.f32 %v1151, %v514
    %v1153 = vpack.c.bf16 %v1152, %v1152
    %1154 = vmatpush.bf16.msra.mxu0 %v577
    %1155 = vmatpush.bf16.msra.mxu0 %v575
    %1156 = vmatpush.bf16.msra.mxu0 %v573
    %1157 = vmatpush.bf16.msra.mxu0 %v571
    %1158 = vmatpush.bf16.msra.mxu0 %v569
    %1159 = vmatpush.bf16.msra.mxu0 %v567
    %1160 = vmatpush.bf16.msra.mxu0 %v565
    %1161 = vmatpush.bf16.msra.mxu0 %v563
    %1162 = vmatmul.bf16.gmra.mxu0 %v1153
    %v1163 = vpop.f32.mrf.mxu0
    %v1164 = vadd.f32 0.0, %v1163
    %v1165 = vpop.f32.mrf.mxu0
    %1166 = vdwg.mxu0
    %1167 = vmatpush.bf16.msra.mxu0 %v578
    %1168 = vmatpush.bf16.msra.mxu0 %v576
    %1169 = vmatpush.bf16.msra.mxu0 %v574
    %1170 = vmatpush.bf16.msra.mxu0 %v572
    %1171 = vmatpush.bf16.msra.mxu0 %v570
    %1172 = vmatpush.bf16.msra.mxu0 %v568
    %1173 = vmatpush.bf16.msra.mxu0 %v566
    %1174 = vmatpush.bf16.msra.mxu0 %v564
    %1175 = vmatmul.bf16.gmra.mxu0 %v1153
    %v1176 = vpop.f32.mrf.mxu0
    %v1177 = vadd.f32 0.0, %v1176
    %v1178 = vpop.f32.mrf.mxu0
    %1179 = vdwg.mxu0
    %v1180 = vld [vmem:[#allocation2 + $0x60] sm:$0xff]
    %v1181 = vld [vmem:[#allocation2 + $0x68] sm:$0xff]
    %v1182 = vadd.f32 %v1180, %v1164
    %v1183 = vadd.f32 %v1181, %v1177
    %v1184 = vxor.u32 %v1182, 2147483648
    %v1185 = vxor.u32 %v1183, 2147483648
    %v1186 = vmul.f32 %v1184, 1.442695
    %v1187 = vpow.pop %v1186
    %v1188 = vmul.f32 %v1185, 1.442695
    %v1189 = vpow.pop %v1188
    %v1190 = vadd.f32 %v1187, 1.0
    %v1191 = vadd.f32 %v1189, 1.0
    %v1192 = vrcp.pop %v1190
    %v1193 = vmul.f32 %v1190, %v1192
    %v1194 = vsub.f32 1.0, %v1193
    %v1195 = vmul.f32 %v1192, %v1194
    %v1196 = vadd.f32 %v1192, %v1195
    %vm1197 = vweird.f32 %v1190
    %vm1198 = vweird.f32 %v1192
    %vm1199 = vmor %vm1197, %vm1198
    %v1200 = vsel %vm1199, %v1192, %v1196
    %v1201 = vand.u32 2147483647, %v1190
    %vm1202 = vcmp.eq.f32.partialorder %v1201, 8.507059e+37
    %v1203 = vand.u32 %v1190, 2147483648
    %v1204 = vor.u32 1.1754944e-38, %v1203
    %v1205 = vsel %vm1202, %v1204, %v1200
    %v1206 = vmul.f32 1.0, %v1205
    %v1207 = vrcp.pop %v1191
    %v1208 = vmul.f32 %v1191, %v1207
    %v1209 = vsub.f32 1.0, %v1208
    %v1210 = vmul.f32 %v1207, %v1209
    %v1211 = vadd.f32 %v1207, %v1210
    %vm1212 = vweird.f32 %v1191
    %vm1213 = vweird.f32 %v1207
    %vm1214 = vmor %vm1212, %vm1213
    %v1215 = vsel %vm1214, %v1207, %v1211
    %v1216 = vand.u32 2147483647, %v1191
    %vm1217 = vcmp.eq.f32.partialorder %v1216, 8.507059e+37
    %v1218 = vand.u32 %v1191, 2147483648
    %v1219 = vor.u32 1.1754944e-38, %v1218
    %v1220 = vsel %vm1217, %v1219, %v1215
    %v1221 = vmul.f32 1.0, %v1220
    %v1222 = vtanh.pop %v1183
    %v1223 = vmul.f32 %v1206, %v1140
    %1225 = vrot.lane.b32.xlu0 %v1222, 64
    %v1226 = vpop.permute.xlu0 %1225
    %v1228 = vmul.f32 %v1206, %v1226
    %1230 = vrot.lane.b32.xlu0 %v1228, 64
    %v1231 = vpop.permute.xlu0 %1230
    %v1233 = vadd.f32 %v1223, %v1231
    %v1234 = vtanh.pop %v1233
    %1236 = vrot.lane.b32.xlu0 %v1234, 64
    %v1237 = vpop.permute.xlu0 %1236
    %v1239 = vmul.f32 %v1221, %v1237
    %1241 = vrot.lane.b32.xlu0 %v1239, 64
    %v1242 = vpop.permute.xlu0 %1241
    %v1244 = vsel %vm685, %v1239, %v1242
    %v1245 = vmul.f32 %v1244, %v514
    %v1246 = vpack.c.bf16 %v1245, %v1245
    %1247 = vmatpush.bf16.msra.mxu0 %v577
    %1248 = vmatpush.bf16.msra.mxu0 %v575
    %1249 = vmatpush.bf16.msra.mxu0 %v573
    %1250 = vmatpush.bf16.msra.mxu0 %v571
    %1251 = vmatpush.bf16.msra.mxu0 %v569
    %1252 = vmatpush.bf16.msra.mxu0 %v567
    %1253 = vmatpush.bf16.msra.mxu0 %v565
    %1254 = vmatpush.bf16.msra.mxu0 %v563
    %1255 = vmatmul.bf16.gmra.mxu0 %v1246
    %v1256 = vpop.f32.mrf.mxu0
    %v1257 = vadd.f32 0.0, %v1256
    %v1258 = vpop.f32.mrf.mxu0
    %1259 = vdwg.mxu0
    %1260 = vmatpush.bf16.msra.mxu0 %v578
    %1261 = vmatpush.bf16.msra.mxu0 %v576
    %1262 = vmatpush.bf16.msra.mxu0 %v574
    %1263 = vmatpush.bf16.msra.mxu0 %v572
    %1264 = vmatpush.bf16.msra.mxu0 %v570
    %1265 = vmatpush.bf16.msra.mxu0 %v568
    %1266 = vmatpush.bf16.msra.mxu0 %v566
    %1267 = vmatpush.bf16.msra.mxu0 %v564
    %1268 = vmatmul.bf16.gmra.mxu0 %v1246
    %v1269 = vpop.f32.mrf.mxu0
    %v1270 = vadd.f32 0.0, %v1269
    %v1271 = vpop.f32.mrf.mxu0
    %1272 = vdwg.mxu0
    %v1273 = vld [vmem:[#allocation2 + $0x70] sm:$0xff]
    %v1274 = vld [vmem:[#allocation2 + $0x78] sm:$0xff]
    %v1275 = vadd.f32 %v1273, %v1257
    %v1276 = vadd.f32 %v1274, %v1270
    %v1277 = vxor.u32 %v1275, 2147483648
    %v1278 = vxor.u32 %v1276, 2147483648
    %v1279 = vmul.f32 %v1277, 1.442695
    %v1280 = vpow.pop %v1279
    %v1281 = vmul.f32 %v1278, 1.442695
    %v1282 = vpow.pop %v1281
    %v1283 = vadd.f32 %v1280, 1.0
    %v1284 = vadd.f32 %v1282, 1.0
    %v1285 = vrcp.pop %v1283
    %v1286 = vmul.f32 %v1283, %v1285
    %v1287 = vsub.f32 1.0, %v1286
    %v1288 = vmul.f32 %v1285, %v1287
    %v1289 = vadd.f32 %v1285, %v1288
    %vm1290 = vweird.f32 %v1283
    %vm1291 = vweird.f32 %v1285
    %vm1292 = vmor %vm1290, %vm1291
    %v1293 = vsel %vm1292, %v1285, %v1289
    %v1294 = vand.u32 2147483647, %v1283
    %vm1295 = vcmp.eq.f32.partialorder %v1294, 8.507059e+37
    %v1296 = vand.u32 %v1283, 2147483648
    %v1297 = vor.u32 1.1754944e-38, %v1296
    %v1298 = vsel %vm1295, %v1297, %v1293
    %v1299 = vmul.f32 1.0, %v1298
    %v1300 = vrcp.pop %v1284
    %v1301 = vmul.f32 %v1284, %v1300
    %v1302 = vsub.f32 1.0, %v1301
    %v1303 = vmul.f32 %v1300, %v1302
    %v1304 = vadd.f32 %v1300, %v1303
    %vm1305 = vweird.f32 %v1284
    %vm1306 = vweird.f32 %v1300
    %vm1307 = vmor %vm1305, %vm1306
    %v1308 = vsel %vm1307, %v1300, %v1304
    %v1309 = vand.u32 2147483647, %v1284
    %vm1310 = vcmp.eq.f32.partialorder %v1309, 8.507059e+37
    %v1311 = vand.u32 %v1284, 2147483648
    %v1312 = vor.u32 1.1754944e-38, %v1311
    %v1313 = vsel %vm1310, %v1312, %v1308
    %v1314 = vmul.f32 1.0, %v1313
    %v1315 = vtanh.pop %v1276
    %v1316 = vmul.f32 %v1299, %v1233
    %1318 = vrot.lane.b32.xlu0 %v1315, 64
    %v1319 = vpop.permute.xlu0 %1318
    %v1321 = vmul.f32 %v1299, %v1319
    %1323 = vrot.lane.b32.xlu0 %v1321, 64
    %v1324 = vpop.permute.xlu0 %1323
    %v1326 = vadd.f32 %v1316, %v1324
    %v1327 = vtanh.pop %v1326
    %1329 = vrot.lane.b32.xlu0 %v1327, 64
    %v1330 = vpop.permute.xlu0 %1329
    %v1332 = vmul.f32 %v1314, %v1330
    %v1333 = vlaneseq
    %v1334 = vshrl.u32 %v1333, 7
    %vm1335 = vcmp.lt.s32.totalorder %v1334, 2
    %v1336 = vsel %vm1335, %v1332, %v1146
    %v1338 = vrot.slane %v1336, 2
    %v1340 = vadd.f32 %v1336, %v1338
    %v1341 = vrot.slane %v1336, 4
    %v1343 = vadd.f32 %v1340, %v1341
    %v1344 = vmul.f32 %v1343, 0.33333334
    %v1346 = vrot.slane %v1344, 2
    %1347 = vrot.lane.b32.xlu0 %v1346, 64
    %v1348 = vpop.permute.xlu0 %1347
    %v1350 = vsel %vm685, %v1336, %v1348
    %v1351 = vpack.c.bf16 %v1350, %v1350
    %v1352 = vld [vmem:[%s6] sm:$0xf]
    %v1353 = vld [vmem:[%s6 + $0x4] sm:$0xf]
    %v1354 = vld [vmem:[%s6 + $0x8] sm:$0xf]
    %v1355 = vld [vmem:[%s6 + $0xc] sm:$0xf]
    %v1356 = vld [vmem:[%s6 + $0x10] sm:$0xf]
    %v1357 = vld [vmem:[%s6 + $0x14] sm:$0xf]
    %v1358 = vld [vmem:[%s6 + $0x18] sm:$0xf]
    %v1359 = vld [vmem:[%s6 + $0x1c] sm:$0xf]
    %v1360 = vld [vmem:[%s6 + $0x20] sm:$0xf]
    %v1361 = vld [vmem:[%s6 + $0x24] sm:$0xf]
    %v1362 = vld [vmem:[%s6 + $0x28] sm:$0xf]
    %v1363 = vld [vmem:[%s6 + $0x2c] sm:$0xf]
    %v1364 = vld [vmem:[%s6 + $0x30] sm:$0xf]
    %v1365 = vld [vmem:[%s6 + $0x34] sm:$0xf]
    %v1366 = vld [vmem:[%s6 + $0x38] sm:$0xf]
    %v1367 = vld [vmem:[%s6 + $0x3c] sm:$0xf]
    %v1368 = vld [vmem:[%s7] sm:$0x1]
    %v1370 = vperm.slane %v1368, 0
    %v1388 = vunpack.c.l.b16 %v1352
    %v1389 = vunpack.c.l.b16 %v1353
    %v1390 = vunpack.c.l.b16 %v1354
    %v1391 = vunpack.c.l.b16 %v1355
    %v1392 = vunpack.c.l.b16 %v1356
    %v1393 = vunpack.c.l.b16 %v1357
    %v1394 = vunpack.c.l.b16 %v1358
    %v1395 = vunpack.c.l.b16 %v1359
    %v1396 = vunpack.c.l.b16 %v1360
    %v1397 = vunpack.c.l.b16 %v1361
    %v1398 = vunpack.c.l.b16 %v1362
    %v1399 = vunpack.c.l.b16 %v1363
    %v1400 = vunpack.c.l.b16 %v1364
    %v1401 = vunpack.c.l.b16 %v1365
    %v1402 = vunpack.c.l.b16 %v1366
    %v1403 = vunpack.c.l.b16 %v1367
    %v1404 = vpack.c.b16 %v1389, %v1388
    %v1405 = vpack.c.b16 %v1391, %v1390
    %v1406 = vpack.c.b16 %v1393, %v1392
    %v1407 = vpack.c.b16 %v1395, %v1394
    %v1408 = vpack.c.b16 %v1397, %v1396
    %v1409 = vpack.c.b16 %v1399, %v1398
    %v1410 = vpack.c.b16 %v1401, %v1400
    %v1411 = vpack.c.b16 %v1403, %v1402
    %1420 = vmatpush.bf16.msra.mxu0 %v1411
    %1421 = vmatpush.bf16.msra.mxu0 %v1410
    %1422 = vmatpush.bf16.msra.mxu0 %v1409
    %1423 = vmatpush.bf16.msra.mxu0 %v1408
    %1424 = vmatpush.bf16.msra.mxu0 %v1407
    %1425 = vmatpush.bf16.msra.mxu0 %v1406
    %1426 = vmatpush.bf16.msra.mxu0 %v1405
    %1427 = vmatpush.bf16.msra.mxu0 %v1404
    %1428 = vmatmul.bf16.gmra.mxu0 %v1351
    %v1429 = vpop.f32.mrf.mxu0
    %v1430 = vadd.f32 %v1370, %v1429
    %v1431 = vpop.f32.mrf.mxu0
    %1432 = vdwg.mxu0
    %v1433 = vmax.f32 %v1430, 0.0
    %v1434 = vpack.c.bf16 %v1433, %v1433
    %v1435 = vld [vmem:[%s8] sm:$0xf]
    %v1436 = vld [vmem:[%s8 + $0x4] sm:$0xf]
    %v1437 = vld [vmem:[%s8 + $0x8] sm:$0xf]
    %v1438 = vld [vmem:[%s8 + $0xc] sm:$0xf]
    %v1439 = vld [vmem:[%s8 + $0x10] sm:$0xf]
    %v1440 = vld [vmem:[%s8 + $0x14] sm:$0xf]
    %v1441 = vld [vmem:[%s8 + $0x18] sm:$0xf]
    %v1442 = vld [vmem:[%s8 + $0x1c] sm:$0xf]
    %v1443 = vld [vmem:[%s9] sm:$0x1]
    %v1445 = vperm.slane %v1443, 0
    %v1455 = vunpack.c.l.b16 %v1435
    %v1456 = vunpack.c.l.b16 %v1436
    %v1457 = vunpack.c.l.b16 %v1437
    %v1458 = vunpack.c.l.b16 %v1438
    %v1459 = vunpack.c.l.b16 %v1439
    %v1460 = vunpack.c.l.b16 %v1440
    %v1461 = vunpack.c.l.b16 %v1441
    %v1462 = vunpack.c.l.b16 %v1442
    %v1463 = vpack.c.b16 %v1456, %v1455
    %v1464 = vpack.c.b16 %v1458, %v1457
    %v1465 = vpack.c.b16 %v1460, %v1459
    %v1466 = vpack.c.b16 %v1462, %v1461
    %v1472 = vsel %vm685, %v1434, 0
    %1474 = vmatpush.bf16.msra.mxu0 0
    %1475 = vmatpush.bf16.msra.mxu0 0
    %1476 = vmatpush.bf16.msra.mxu0 0
    %1477 = vmatpush.bf16.msra.mxu0 0
    %1478 = vmatpush.bf16.msra.mxu0 %v1466
    %1479 = vmatpush.bf16.msra.mxu0 %v1465
    %1480 = vmatpush.bf16.msra.mxu0 %v1464
    %1481 = vmatpush.bf16.msra.mxu0 %v1463
    %1482 = vmatmul.bf16.gmra.mxu0 %v1472
    %v1483 = vpop.f32.mrf.mxu0
    %v1484 = vadd.f32 %v1445, %v1483
    %v1485 = vpop.f32.mrf.mxu0
    %1486 = vdwg.mxu0
    %v1487 = vsel %vm685, %v1336, 0.0
    %1488 = vst [vmem:[%s10] sm:$0xff] %v1487
    %1490 = vrot.lane.b32.xlu0 %v1484, 64
    %v1491 = vpop.permute.xlu0 %1490
    %vm1493 = vcmask 583168
    %1494 = vst.msk [vmem:[%s10] sm:$0x3] %vm1493, %v1491
    // Predicated region
    $region46: #{seq_model_forward.1} parent=1 // pred_check
      _
    $region47: #{seq_model_forward.1} parent=1 // pred_check_branch
      %1496 = sbr.rel (0) target = $region49
    $region48: #{seq_model_forward.1} parent=1 // pred_region
      _
    $region49: #{seq_model_forward.1} parent=1 // pred_fallthru
      _
    // Predicated region
    $region50: #{seq_model_forward.1} parent=1 // pred_check
      _
    $region51: #{seq_model_forward.1} parent=1 // pred_check_branch
      %1498 = sbr.rel (0) target = $region53
    $region52: #{seq_model_forward.1} parent=1 // pred_region
      _
    $region53: #{seq_model_forward.1} parent=1 // pred_fallthru
      _
    %1499 = vsyncpa [#allocation4], 1

</llo_original>
